<compile_context>
chip_gen: v6e
topology: v6e:2x2x1
jax: 0.10.0
libtpu: 0.0.40
codegen_flags: <defaults>
</compile_context>

<pallas_src>
import functools
import numpy as np
import jax
import jax.numpy as jnp
from jax.experimental import pallas as pl
from jax.experimental.pallas import tpu as pltpu


# ---------------------------------------------------------------- activation
def _swish(x):
    # DimeNet uses swish; written explicitly so it lowers to EUP exp + VPU mul.
    return x * (1.0 / (1.0 + jnp.exp(-x)))


# ---------------------------------------------------------------- kernel 1: per-triplet message
def message_kernel(mg_ref, rbfg_ref, sbf_ref,
                   w_kj_ref, b_kj_ref, w_rbf_ref, w_sbf_ref, w_bf_ref,
                   msgs_ref):
    # x_kj of the gathered source edge of each triplet (fused edge_transfer half)
    rbf_p = jnp.dot(rbfg_ref[...], w_rbf_ref[...], preferred_element_type=jnp.float32)
    x_kj = _swish(jnp.dot(mg_ref[...], w_kj_ref[...],
                          preferred_element_type=jnp.float32) + b_kj_ref[...])
    x_kj = x_kj * rbf_p                                             # (tile_t, emb)

    # sbf projection: (tile_t, f_sbf) @ (f_sbf, nbil)
    sbf_p = jnp.dot(sbf_ref[...], w_sbf_ref[...], preferred_element_type=jnp.float32)

    # bilinear as ONE lane-dense matmul: (tile_t, emb) @ (emb, nbil*emb)
    xw = jnp.dot(x_kj, w_bf_ref[...], preferred_element_type=jnp.float32)

    nbil = w_sbf_ref.shape[1]
    emb = mg_ref.shape[1]
    msgs = jnp.zeros_like(x_kj)
    for j in range(nbil):                     # VPU reduce over the bilinear axis
        msgs = msgs + sbf_p[:, j:j + 1] * xw[:, j * emb:(j + 1) * emb]
    msgs_ref[...] = msgs


def message_stage(m_g, rbf_g, sbf, params, *, tile_t):
    T_pad, emb = m_g.shape
    nrad = rbf_g.shape[1]
    f_sbf = sbf.shape[1]
    nbil = params["w_sbf"].shape[1]
    const2 = lambda i: (0, 0)
    return pl.pallas_call(
        message_kernel,
        out_shape=jax.ShapeDtypeStruct((T_pad, emb), jnp.float32),
        grid=(T_pad // tile_t,),
        in_specs=[
            pl.BlockSpec((tile_t, emb), lambda i: (i, 0)),
            pl.BlockSpec((tile_t, nrad), lambda i: (i, 0)),
            pl.BlockSpec((tile_t, f_sbf), lambda i: (i, 0)),
            pl.BlockSpec((emb, emb), const2),
            pl.BlockSpec((1, emb), const2),
            pl.BlockSpec((nrad, emb), const2),
            pl.BlockSpec((f_sbf, nbil), const2),
            pl.BlockSpec((emb, nbil * emb), const2),
        ],
        out_specs=pl.BlockSpec((tile_t, emb), lambda i: (i, 0)),
        compiler_params=pltpu.CompilerParams(dimension_semantics=("parallel",)),
    )(m_g, rbf_g, sbf, params["w_kj"], params["b_kj"], params["w_rbf"],
      params["w_sbf"], params["w_bilin_flat"])


# ---------------------------------------------------------------- kernel 2: scatter-sum + x_ji + residual update
def scatter_update_kernel(msgs_ref, dst_ref, m_ref,
                          w_ji_ref, b_ji_ref,
                          wb_before_ref, bb_before_ref,
                          w_final_ref, b_final_ref,
                          wb_after_ref, bb_after_ref,
                          out_ref, acc_ref,
                          *, num_before, num_after, tile_e):
    t = pl.program_id(1)

    @pl.when(t == 0)
    def _():
        acc_ref[...] = jnp.zeros_like(acc_ref)

    # scatter-sum over destination edges via an in-kernel one-hot tile
    # (tile_e, tile_t) built from dst ids -- no dense (E, T) one-hot in HBM.
    tile_t = dst_ref.shape[1]
    e_ids = pl.program_id(0) * tile_e + jax.lax.broadcasted_iota(
        jnp.int32, (tile_e, tile_t), 0)
    mask = (e_ids == dst_ref[...]).astype(jnp.float32)
    acc_ref[...] += jnp.dot(mask, msgs_ref[...], preferred_element_type=jnp.float32)

    # On the last reduction step: x_ji dense + residual stacks + skip, fused.
    @pl.when(t == pl.num_programs(1) - 1)
    def _():
        def dense(h, w, b):
            return jnp.dot(h, w, preferred_element_type=jnp.float32) + b

        m = m_ref[...]
        x_ji = _swish(dense(m, w_ji_ref[...], b_ji_ref[...]))
        h = acc_ref[...] + x_ji
        for l in range(num_before):                    # ResidualLayer(s) before skip
            r = h
            h = _swish(dense(h, wb_before_ref[2 * l], bb_before_ref[2 * l]))
            h = _swish(dense(h, wb_before_ref[2 * l + 1], bb_before_ref[2 * l + 1]))
            h = r + h
        h = _swish(dense(h, w_final_ref[...], b_final_ref[...]))   # final_before_skip
        m_new = m + h                                              # skip connection
        for l in range(num_after):                     # ResidualLayer(s) after skip
            r = m_new
            m_new = _swish(dense(m_new, wb_after_ref[2 * l], bb_after_ref[2 * l]))
            m_new = _swish(dense(m_new, wb_after_ref[2 * l + 1], bb_after_ref[2 * l + 1]))
            m_new = r + m_new
        out_ref[...] = m_new


def scatter_update_stage(msgs, dst_row, m_pad, params,
                         *, num_before, num_after, tile_e, tile_t):
    E_pad, emb = m_pad.shape
    T_pad = msgs.shape[0]
    nb2 = params["wb_before"].shape[0]
    na2 = params["wb_after"].shape[0]
    kern = functools.partial(scatter_update_kernel, num_before=num_before,
                             num_after=num_after, tile_e=tile_e)
    e_map = lambda e, t: (e, 0)
    const2 = lambda e, t: (0, 0)
    const3 = lambda e, t: (0, 0, 0)
    return pl.pallas_call(
        kern,
        out_shape=jax.ShapeDtypeStruct((E_pad, emb), jnp.float32),
        grid=(E_pad // tile_e, T_pad // tile_t),
        in_specs=[
            pl.BlockSpec((tile_t, emb), lambda e, t: (t, 0)),   # msgs (reduction-tiled)
            pl.BlockSpec((1, tile_t), lambda e, t: (0, t)),     # dst ids (int32 row)
            pl.BlockSpec((tile_e, emb), e_map),                 # m (resident across t)
            pl.BlockSpec((emb, emb), const2),                   # w_ji
            pl.BlockSpec((1, emb), const2),                     # b_ji
            pl.BlockSpec((nb2, emb, emb), const3),
            pl.BlockSpec((nb2, 1, emb), const3),
            pl.BlockSpec((emb, emb), const2),
            pl.BlockSpec((1, emb), const2),
            pl.BlockSpec((na2, emb, emb), const3),
            pl.BlockSpec((na2, 1, emb), const3),
        ],
        out_specs=pl.BlockSpec((tile_e, emb), e_map),
        scratch_shapes=[pltpu.VMEM((tile_e, emb), jnp.float32)],
        compiler_params=pltpu.CompilerParams(
            dimension_semantics=("parallel", "arbitrary")),
    )(msgs, dst_row, m_pad, params["w_ji"], params["b_ji"],
      params["wb_before"], params["bb_before"],
      params["w_final"], params["b_final"],
      params["wb_after"], params["bb_after"])


# ---------------------------------------------------------------- full forward
def _pad_rows(x, target):
    pad = target - x.shape[0]
    if pad:
        x = jnp.pad(x, ((0, pad),) + ((0, 0),) * (x.ndim - 1))
    return x


def dimeconv_forward(m, rbf, sbf, src_idx, dst_idx, params,
                     *, num_before, num_after, tile_e=256, tile_t=128):
    """tile_e: edge-tile rows (multiple of 8); tile_t: triplet-tile rows
    (multiple of 128 because the dst-id row block puts it on the lane axis).
    Raise both for real graph sizes (they are the MXU-M / reduction-K dims)."""
    E, emb = m.shape
    T = sbf.shape[0]
    assert tile_e % 8 == 0 and tile_t % 128 == 0
    E_pad = pl.cdiv(E, tile_e) * tile_e
    T_pad = pl.cdiv(T, tile_t) * tile_t

    # DGL line-graph plumbing: gather source-edge features per triplet.
    # Done on the raw inputs so x_kj / x_ji / m_update never round-trip HBM.
    # TODO(synk): move this gather in-kernel (scalar-prefetched src_idx + DMA gather).
    m_g = _pad_rows(jnp.take(m, src_idx, axis=0), T_pad)
    rbf_g = _pad_rows(jnp.take(rbf, src_idx, axis=0), T_pad)
    sbf_pad = _pad_rows(sbf, T_pad)
    # padded triplets get dst = -1 so they never match a real edge row.
    dst_row = jnp.pad(dst_idx.astype(jnp.int32), (0, T_pad - T),
                      constant_values=-1)[None, :]
    m_pad = _pad_rows(m, E_pad)

    msgs = message_stage(m_g, rbf_g, sbf_pad, params, tile_t=tile_t)
    m_new = scatter_update_stage(msgs, dst_row, m_pad, params,
                                 num_before=num_before, num_after=num_after,
                                 tile_e=tile_e, tile_t=tile_t)
    return m_new[:E]


# ---------------------------------------------------------------- pure-JAX reference
def dimeconv_reference(m, rbf, sbf, src_idx, dst_idx, params,
                       *, num_before, num_after):
    E, emb = m.shape
    rbf_p = rbf @ params["w_rbf"]
    x_ji = _swish(m @ params["w_ji"] + params["b_ji"])
    x_kj = _swish(m @ params["w_kj"] + params["b_kj"]) * rbf_p
    sbf_p = sbf @ params["w_sbf"]
    xkj_g = x_kj[src_idx]
    msgs = jnp.einsum("wj,wl,ijl->wi", sbf_p, xkj_g, params["W_bilin"])
    mupd = jnp.zeros((E, emb), jnp.float32).at[dst_idx].add(msgs)
    h = mupd + x_ji
    for l in range(num_before):
        r = h
        h = _swish(h @ params["wb_before"][2 * l] + params["bb_before"][2 * l])
        h = _swish(h @ params["wb_before"][2 * l + 1] + params["bb_before"][2 * l + 1])
        h = r + h
    h = _swish(h @ params["w_final"] + params["b_final"])
    m_new = m + h
    for l in range(num_after):
        r = m_new
        m_new = _swish(m_new @ params["wb_after"][2 * l] + params["bb_after"][2 * l])
        m_new = _swish(m_new @ params["wb_after"][2 * l + 1] + params["bb_after"][2 * l + 1])
        m_new = r + m_new
    return m_new


# ---------------------------------------------------------------- main
if __name__ == "__main__":
    # Hyperparameters (small, consistent with DimeNet defaults in spirit)
    emb_size = 32
    num_radial = 8
    num_spherical = 4
    num_bilinear = 8
    num_before_skip = 1
    num_after_skip = 2
    E = 40           # edges of g (not a tile multiple -> exercises padding)
    T = 200          # triplets = edges of line graph l_g
    TILE_E = 16      # small for the toy; >= 2 edge tiles keeps both v7x TCs busy
    TILE_T = 128     # reduction tile over triplets (lane-axis block for dst ids)
    f_sbf = num_radial * num_spherical

    key = jax.random.PRNGKey(0)
    ks = jax.random.split(key, 20)

    def glorot(k, shape):
        fan_in, fan_out = shape[0], shape[-1]
        std = np.sqrt(2.0 / (fan_in + fan_out))
        return (std * jax.random.normal(k, shape)).astype(jnp.float32)

    # Linear weights stored as (in_features, out_features): y = x @ W + b.
    W_bilin = (2.0 / emb_size) * jax.random.normal(
        ks[0], (emb_size, num_bilinear, emb_size)).astype(jnp.float32)
    params = {
        "w_rbf": glorot(ks[1], (num_radial, emb_size)),
        "w_sbf": glorot(ks[2], (f_sbf, num_bilinear)),
        "w_ji": glorot(ks[3], (emb_size, emb_size)),
        "b_ji": jnp.zeros((1, emb_size), jnp.float32),
        "w_kj": glorot(ks[4], (emb_size, emb_size)),
        "b_kj": jnp.zeros((1, emb_size), jnp.float32),
        "W_bilin": W_bilin,
        # kernel layout: Wf[l, j*emb + i] = W_bilin[i, j, l] -> one (emb, nbil*emb) matmul
        "w_bilin_flat": jnp.transpose(W_bilin, (2, 1, 0)).reshape(
            emb_size, num_bilinear * emb_size),
        "wb_before": glorot(ks[5], (2 * num_before_skip, emb_size, emb_size)),
        "bb_before": 0.01 * jax.random.normal(
            ks[6], (2 * num_before_skip, 1, emb_size)).astype(jnp.float32),
        "w_final": glorot(ks[7], (emb_size, emb_size)),
        "b_final": jnp.zeros((1, emb_size), jnp.float32),
        "wb_after": glorot(ks[8], (2 * num_after_skip, emb_size, emb_size)),
        "bb_after": 0.01 * jax.random.normal(
            ks[9], (2 * num_after_skip, 1, emb_size)).astype(jnp.float32),
    }

    # Synthetic graph data (edge features of g, triplet features of l_g)
    m = jax.random.normal(ks[10], (E, emb_size)).astype(jnp.float32)
    rbf = jax.random.normal(ks[11], (E, num_radial)).astype(jnp.float32)
    sbf = jax.random.normal(ks[12], (T, f_sbf)).astype(jnp.float32)
    src_idx = jax.random.randint(ks[13], (T,), 0, E)   # source edge of each triplet
    dst_idx = jax.random.randint(ks[14], (T,), 0, E)   # destination edge of each triplet

    out = dimeconv_forward(m, rbf, sbf, src_idx, dst_idx, params,
                           num_before=num_before_skip,
                           num_after=num_after_skip,
                           tile_e=TILE_E, tile_t=TILE_T)
    out = jax.block_until_ready(out)

    ref = dimeconv_reference(m, rbf, sbf, src_idx, dst_idx, params,
                             num_before=num_before_skip,
                             num_after=num_after_skip)
    ref = jax.block_until_ready(ref)

    np.testing.assert_allclose(np.asarray(out), np.asarray(ref), rtol=1e-4, atol=1e-4)
    print("KERNEL_OK")
</pallas_src>

<mosaic_0001>
module attributes {stable_mosaic.version = 11 : i64} {
  func.func @message_kernel(%arg0: i32, %arg1: memref<128x32xf32, #tpu.memory_space<vmem>>, %arg2: memref<128x8xf32, #tpu.memory_space<vmem>>, %arg3: memref<128x32xf32, #tpu.memory_space<vmem>>, %arg4: memref<32x32xf32, #tpu.memory_space<vmem>>, %arg5: memref<1x32xf32, #tpu.memory_space<vmem>>, %arg6: memref<8x32xf32, #tpu.memory_space<vmem>>, %arg7: memref<32x8xf32, #tpu.memory_space<vmem>>, %arg8: memref<32x256xf32, #tpu.memory_space<vmem>>, %arg9: memref<128x32xf32, #tpu.memory_space<vmem>>) attributes {dimension_semantics = [#tpu.dimension_semantics<parallel>], iteration_bounds = array<i64: 2>, scalar_prefetch = 0 : i64, scratch_operands = 0 : i64, tpu.core_type = #tpu.core_type<tc>, window_params = [{transform_indices = @transform_0, window_bounds = array<i64: 128, 32>}, {transform_indices = @transform_1, window_bounds = array<i64: 128, 8>}, {transform_indices = @transform_2, window_bounds = array<i64: 128, 32>}, {pipeline_mode = #tpu.pipeline_mode<synchronous>, transform_indices = @transform_3, window_bounds = array<i64: 32, 32>}, {pipeline_mode = #tpu.pipeline_mode<synchronous>, transform_indices = @transform_4, window_bounds = array<i64: 1, 32>}, {pipeline_mode = #tpu.pipeline_mode<synchronous>, transform_indices = @transform_5, window_bounds = array<i64: 8, 32>}, {pipeline_mode = #tpu.pipeline_mode<synchronous>, transform_indices = @transform_6, window_bounds = array<i64: 32, 8>}, {pipeline_mode = #tpu.pipeline_mode<synchronous>, transform_indices = @transform_7, window_bounds = array<i64: 32, 256>}, {transform_indices = @transform_8, window_bounds = array<i64: 128, 32>}]} {
    %c0 = arith.constant 0 : index
    %c0_0 = arith.constant 0 : index
    %0 = vector.load %arg2[%c0, %c0_0] : memref<128x8xf32, #tpu.memory_space<vmem>>, vector<128x8xf32>
    %c0_1 = arith.constant 0 : index
    %c0_2 = arith.constant 0 : index
    %1 = vector.load %arg6[%c0_1, %c0_2] : memref<8x32xf32, #tpu.memory_space<vmem>>, vector<8x32xf32>
    %cst = arith.constant dense<0.000000e+00> : vector<128x32xf32>
    %2 = tpu.matmul %0, %1, %cst {dimension_numbers = #tpu.dot_dimension_numbers<[1], [0], [0], [1], [0, 0, 1, 1], [], []>} : vector<128x8xf32>, vector<8x32xf32>, vector<128x32xf32> -> vector<128x32xf32>
    %c0_3 = arith.constant 0 : index
    %c0_4 = arith.constant 0 : index
    %3 = vector.load %arg1[%c0_3, %c0_4] : memref<128x32xf32, #tpu.memory_space<vmem>>, vector<128x32xf32>
    %c0_5 = arith.constant 0 : index
    %c0_6 = arith.constant 0 : index
    %4 = vector.load %arg4[%c0_5, %c0_6] : memref<32x32xf32, #tpu.memory_space<vmem>>, vector<32x32xf32>
    %cst_7 = arith.constant dense<0.000000e+00> : vector<128x32xf32>
    %5 = tpu.matmul %3, %4, %cst_7 {dimension_numbers = #tpu.dot_dimension_numbers<[1], [0], [0], [1], [0, 0, 1, 1], [], []>} : vector<128x32xf32>, vector<32x32xf32>, vector<128x32xf32> -> vector<128x32xf32>
    %c0_8 = arith.constant 0 : index
    %c0_9 = arith.constant 0 : index
    %6 = vector.load %arg5[%c0_8, %c0_9] : memref<1x32xf32, #tpu.memory_space<vmem>>, vector<1x32xf32>
    %7 = vector.broadcast %6 : vector<1x32xf32> to vector<128x32xf32>
    %8 = arith.addf %5, %7 : vector<128x32xf32>
    %cst_10 = arith.constant 0.000000e+00 : f32
    %9 = vector.broadcast %cst_10 : f32 to vector<128x32xf32>
    %10 = arith.subf %9, %8 : vector<128x32xf32>
    %11 = math.exp %10 : vector<128x32xf32>
    %cst_11 = arith.constant 1.000000e+00 : f32
    %12 = vector.broadcast %cst_11 : f32 to vector<128x32xf32>
    %13 = arith.addf %12, %11 : vector<128x32xf32>
    %cst_12 = arith.constant 1.000000e+00 : f32
    %14 = vector.broadcast %cst_12 : f32 to vector<128x32xf32>
    %15 = arith.divf %14, %13 : vector<128x32xf32>
    %16 = arith.mulf %8, %15 : vector<128x32xf32>
    %17 = arith.mulf %16, %2 : vector<128x32xf32>
    %c0_13 = arith.constant 0 : index
    %c0_14 = arith.constant 0 : index
    %18 = vector.load %arg3[%c0_13, %c0_14] : memref<128x32xf32, #tpu.memory_space<vmem>>, vector<128x32xf32>
    %c0_15 = arith.constant 0 : index
    %c0_16 = arith.constant 0 : index
    %19 = vector.load %arg7[%c0_15, %c0_16] : memref<32x8xf32, #tpu.memory_space<vmem>>, vector<32x8xf32>
    %cst_17 = arith.constant dense<0.000000e+00> : vector<128x8xf32>
    %20 = tpu.matmul %18, %19, %cst_17 {dimension_numbers = #tpu.dot_dimension_numbers<[1], [0], [0], [1], [0, 0, 1, 1], [], []>} : vector<128x32xf32>, vector<32x8xf32>, vector<128x8xf32> -> vector<128x8xf32>
    %c0_18 = arith.constant 0 : index
    %c0_19 = arith.constant 0 : index
    %21 = vector.load %arg8[%c0_18, %c0_19] : memref<32x256xf32, #tpu.memory_space<vmem>>, vector<32x256xf32>
    %cst_20 = arith.constant dense<0.000000e+00> : vector<128x256xf32>
    %22 = tpu.matmul %17, %21, %cst_20 {dimension_numbers = #tpu.dot_dimension_numbers<[1], [0], [0], [1], [0, 0, 1, 1], [], []>} : vector<128x32xf32>, vector<32x256xf32>, vector<128x256xf32> -> vector<128x256xf32>
    %cst_21 = arith.constant 0.000000e+00 : f32
    %23 = vector.broadcast %cst_21 : f32 to vector<128x32xf32>
    %24 = vector.extract_strided_slice %20 {offsets = [0, 0], sizes = [128, 1], strides = [1, 1]} : vector<128x8xf32> to vector<128x1xf32>
    %25 = vector.extract_strided_slice %22 {offsets = [0, 0], sizes = [128, 32], strides = [1, 1]} : vector<128x256xf32> to vector<128x32xf32>
    %26 = vector.broadcast %24 : vector<128x1xf32> to vector<128x32xf32>
    %27 = arith.mulf %26, %25 : vector<128x32xf32>
    %28 = arith.addf %23, %27 : vector<128x32xf32>
    %29 = vector.extract_strided_slice %20 {offsets = [0, 1], sizes = [128, 1], strides = [1, 1]} : vector<128x8xf32> to vector<128x1xf32>
    %30 = vector.extract_strided_slice %22 {offsets = [0, 32], sizes = [128, 32], strides = [1, 1]} : vector<128x256xf32> to vector<128x32xf32>
    %31 = vector.broadcast %29 : vector<128x1xf32> to vector<128x32xf32>
    %32 = arith.mulf %31, %30 : vector<128x32xf32>
    %33 = arith.addf %28, %32 : vector<128x32xf32>
    %34 = vector.extract_strided_slice %20 {offsets = [0, 2], sizes = [128, 1], strides = [1, 1]} : vector<128x8xf32> to vector<128x1xf32>
    %35 = vector.extract_strided_slice %22 {offsets = [0, 64], sizes = [128, 32], strides = [1, 1]} : vector<128x256xf32> to vector<128x32xf32>
    %36 = vector.broadcast %34 : vector<128x1xf32> to vector<128x32xf32>
    %37 = arith.mulf %36, %35 : vector<128x32xf32>
    %38 = arith.addf %33, %37 : vector<128x32xf32>
    %39 = vector.extract_strided_slice %20 {offsets = [0, 3], sizes = [128, 1], strides = [1, 1]} : vector<128x8xf32> to vector<128x1xf32>
    %40 = vector.extract_strided_slice %22 {offsets = [0, 96], sizes = [128, 32], strides = [1, 1]} : vector<128x256xf32> to vector<128x32xf32>
    %41 = vector.broadcast %39 : vector<128x1xf32> to vector<128x32xf32>
    %42 = arith.mulf %41, %40 : vector<128x32xf32>
    %43 = arith.addf %38, %42 : vector<128x32xf32>
    %44 = vector.extract_strided_slice %20 {offsets = [0, 4], sizes = [128, 1], strides = [1, 1]} : vector<128x8xf32> to vector<128x1xf32>
    %45 = vector.extract_strided_slice %22 {offsets = [0, 128], sizes = [128, 32], strides = [1, 1]} : vector<128x256xf32> to vector<128x32xf32>
    %46 = vector.broadcast %44 : vector<128x1xf32> to vector<128x32xf32>
    %47 = arith.mulf %46, %45 : vector<128x32xf32>
    %48 = arith.addf %43, %47 : vector<128x32xf32>
    %49 = vector.extract_strided_slice %20 {offsets = [0, 5], sizes = [128, 1], strides = [1, 1]} : vector<128x8xf32> to vector<128x1xf32>
    %50 = vector.extract_strided_slice %22 {offsets = [0, 160], sizes = [128, 32], strides = [1, 1]} : vector<128x256xf32> to vector<128x32xf32>
    %51 = vector.broadcast %49 : vector<128x1xf32> to vector<128x32xf32>
    %52 = arith.mulf %51, %50 : vector<128x32xf32>
    %53 = arith.addf %48, %52 : vector<128x32xf32>
    %54 = vector.extract_strided_slice %20 {offsets = [0, 6], sizes = [128, 1], strides = [1, 1]} : vector<128x8xf32> to vector<128x1xf32>
    %55 = vector.extract_strided_slice %22 {offsets = [0, 192], sizes = [128, 32], strides = [1, 1]} : vector<128x256xf32> to vector<128x32xf32>
    %56 = vector.broadcast %54 : vector<128x1xf32> to vector<128x32xf32>
    %57 = arith.mulf %56, %55 : vector<128x32xf32>
    %58 = arith.addf %53, %57 : vector<128x32xf32>
    %59 = vector.extract_strided_slice %20 {offsets = [0, 7], sizes = [128, 1], strides = [1, 1]} : vector<128x8xf32> to vector<128x1xf32>
    %60 = vector.extract_strided_slice %22 {offsets = [0, 224], sizes = [128, 32], strides = [1, 1]} : vector<128x256xf32> to vector<128x32xf32>
    %61 = vector.broadcast %59 : vector<128x1xf32> to vector<128x32xf32>
    %62 = arith.mulf %61, %60 : vector<128x32xf32>
    %63 = arith.addf %58, %62 : vector<128x32xf32>
    %c0_22 = arith.constant 0 : index
    %c0_23 = arith.constant 0 : index
    %64 = vector.load %arg9[%c0_22, %c0_23] : memref<128x32xf32, #tpu.memory_space<vmem>>, vector<128x32xf32>
    tpu.vector_store %arg9[%c0_22, %c0_23], %63 {strides = array<i32>} : memref<128x32xf32, #tpu.memory_space<vmem>>, vector<128x32xf32>,
    return
  }
  func.func @transform_0(%arg0: i32) -> (i32, i32) {
    %c0_i32 = arith.constant 0 : i32
    %c0_i32_0 = arith.constant 0 : i32
    return %arg0, %c0_i32 : i32, i32
  }
  func.func @transform_1(%arg0: i32) -> (i32, i32) {
    %c0_i32 = arith.constant 0 : i32
    %c0_i32_0 = arith.constant 0 : i32
    return %arg0, %c0_i32 : i32, i32
  }
  func.func @transform_2(%arg0: i32) -> (i32, i32) {
    %c0_i32 = arith.constant 0 : i32
    %c0_i32_0 = arith.constant 0 : i32
    return %arg0, %c0_i32 : i32, i32
  }
  func.func @transform_3(%arg0: i32) -> (i32, i32) {
    %c0_i32 = arith.constant 0 : i32
    %c0_i32_0 = arith.constant 0 : i32
    %c0_i32_1 = arith.constant 0 : i32
    return %c0_i32, %c0_i32_0 : i32, i32
  }
  func.func @transform_4(%arg0: i32) -> (i32, i32) {
    %c0_i32 = arith.constant 0 : i32
    %c0_i32_0 = arith.constant 0 : i32
    %c0_i32_1 = arith.constant 0 : i32
    return %c0_i32, %c0_i32_0 : i32, i32
  }
  func.func @transform_5(%arg0: i32) -> (i32, i32) {
    %c0_i32 = arith.constant 0 : i32
    %c0_i32_0 = arith.constant 0 : i32
    %c0_i32_1 = arith.constant 0 : i32
    return %c0_i32, %c0_i32_0 : i32, i32
  }
  func.func @transform_6(%arg0: i32) -> (i32, i32) {
    %c0_i32 = arith.constant 0 : i32
    %c0_i32_0 = arith.constant 0 : i32
    %c0_i32_1 = arith.constant 0 : i32
    return %c0_i32, %c0_i32_0 : i32, i32
  }
  func.func @transform_7(%arg0: i32) -> (i32, i32) {
    %c0_i32 = arith.constant 0 : i32
    %c0_i32_0 = arith.constant 0 : i32
    %c0_i32_1 = arith.constant 0 : i32
    return %c0_i32, %c0_i32_0 : i32, i32
  }
  func.func @transform_8(%arg0: i32) -> (i32, i32) {
    %c0_i32 = arith.constant 0 : i32
    %c0_i32_0 = arith.constant 0 : i32
    return %arg0, %c0_i32 : i32, i32
  }
}

</mosaic_0001>

<llo_original>
// kernel: tpu_custom_call.1
$region0: #{tpu_custom_call.1}
  #allocation0 [shape = 'u32[]', space=smem, size = 0x4, offset = 0x4, fixed_abs, tag = 'smem constant byte address 0x4 - core index']
  #allocation1 [shape = 'u32[144,128]{1,0:T(1,128)}', space=vmem, size = 0x12000, scoped, tag = 'internal scratch']
  %s0 = inlined_call_operand.vmem [shape: f32[256,32], index: 0, kind: input, shape index: {}]
  %s1 = inlined_call_operand.vmem [shape: f32[256,8], index: 1, kind: input, shape index: {}]
  %s2 = inlined_call_operand.vmem [shape: f32[256,32], index: 2, kind: input, shape index: {}]
  %s3 = inlined_call_operand.vmem [shape: f32[32,32], index: 3, kind: input, shape index: {}]
  %s4 = inlined_call_operand.vmem [shape: f32[1,32], index: 4, kind: input, shape index: {}]
  %s5 = inlined_call_operand.vmem [shape: f32[8,32], index: 5, kind: input, shape index: {}]
  %s6 = inlined_call_operand.vmem [shape: f32[32,8], index: 6, kind: input, shape index: {}]
  %s7 = inlined_call_operand.vmem [shape: f32[32,256], index: 7, kind: input, shape index: {}]
  %s8 = inlined_call_operand.vmem [shape: f32[256,32], index: 8, kind: output, shape index: {}]
  %s9 = sld [smem:[#allocation0]]
  $region65: #{tpu_custom_call.1} parent=0
    _
  %s11 = ssub.s32 1, %s9
  %s12 = scalar_select 0, %s11, %s9
  loop: start=0, step=1, limit=4
  $region2: #{tpu_custom_call.1} parent=0 // loop_pre_header
    _
  $region3: #{tpu_custom_call.1} parent=0 // loop_header
    %s14 = sphi 0, %s18
    %p15 = scmp.ge.s32.totalorder %s14, 4
    %s24 = sphi 0, %s26
    %s27 = sphi 0, %s24
    %s28 = sphi 0, %s27
    %s44 = sphi 0, %s28
    %s50 = sphi 0, %s52
    %s53 = sphi 0, %s50
    %s54 = sphi 0, %s53
    %s70 = sphi 0, %s54
    %s76 = sphi 0, %s78
    %s79 = sphi 0, %s76
    %s80 = sphi 0, %s79
    %s96 = sphi 0, %s80
    %s100 = sphi 0, %s100
    %s102 = sphi 0, %s100
    %s103 = sphi 0, %s102
    %s117 = sphi 0, %s103
    %s121 = sphi 0, %s121
    %s123 = sphi 0, %s121
    %s124 = sphi 0, %s123
    %s138 = sphi 0, %s124
    %s142 = sphi 0, %s142
    %s144 = sphi 0, %s142
    %s145 = sphi 0, %s144
    %s159 = sphi 0, %s145
    %s163 = sphi 0, %s163
    %s165 = sphi 0, %s163
    %s166 = sphi 0, %s165
    %s180 = sphi 0, %s166
    %s184 = sphi 0, %s184
    %s186 = sphi 0, %s184
    %s187 = sphi 0, %s186
    %s201 = sphi 0, %s187
    %s207 = sphi 0, %s209
    %s210 = sphi 0, %s207
    %s211 = sphi 0, %s210
    %s227 = sphi 0, %s211
  $region4: #{tpu_custom_call.1} parent=0 // loop_header_branch
    %17 = sbr.rel (%p15) target = $region8
  $region5: #{tpu_custom_call.1} parent=0 // loop_body
    %s19 = ssub.s32 %s14, 1
    %s20 = ssub.s32 %s14, 2
    %s21 = sadd.s32 %s14, 1
    %s22 = ssub.s32 %s14, %s21
    %p23 = scmp.eq.s32.totalorder %s22, 0
    %s25 = sadd.s32 %s24, 1
    %s26 = scalar_select %p23, %s24, %s25
    %p29 = pneg %p23
    %p30 = scmp.eq.s32.totalorder %s14, 1
    %p31 = por %p29, %p30
    %p32 = scmp.ne.s32.totalorder %s24, %s27
    %p33 = scmp.eq.s32.totalorder %s14, 0
    %p34 = por %p32, %p33
    %p35 = scmp.ne.s32.totalorder %s24, %s27
    %p36 = scmp.eq.s32.totalorder %s19, 1
    %p37 = por %p35, %p36
    %p38 = scmp.ne.s32.totalorder %s27, %s28
    %p39 = scmp.eq.s32.totalorder %s19, 0
    %p40 = por %p38, %p39
    %p41 = scmp.ne.s32.totalorder %s27, %s28
    %p42 = scmp.eq.s32.totalorder %s20, 1
    %p43 = por %p41, %p42
    %p45 = scmp.ne.s32.totalorder %s28, %s44
    %p46 = scmp.eq.s32.totalorder %s20, 0
    %p47 = por %p45, %p46
    %s48 = ssub.s32 %s14, %s21
    %p49 = scmp.eq.s32.totalorder %s48, 0
    %s51 = sadd.s32 %s50, 1
    %s52 = scalar_select %p49, %s50, %s51
    %p55 = pneg %p49
    %p56 = scmp.eq.s32.totalorder %s14, 1
    %p57 = por %p55, %p56
    %p58 = scmp.ne.s32.totalorder %s50, %s53
    %p59 = scmp.eq.s32.totalorder %s14, 0
    %p60 = por %p58, %p59
    %p61 = scmp.ne.s32.totalorder %s50, %s53
    %p62 = scmp.eq.s32.totalorder %s19, 1
    %p63 = por %p61, %p62
    %p64 = scmp.ne.s32.totalorder %s53, %s54
    %p65 = scmp.eq.s32.totalorder %s19, 0
    %p66 = por %p64, %p65
    %p67 = scmp.ne.s32.totalorder %s53, %s54
    %p68 = scmp.eq.s32.totalorder %s20, 1
    %p69 = por %p67, %p68
    %p71 = scmp.ne.s32.totalorder %s54, %s70
    %p72 = scmp.eq.s32.totalorder %s20, 0
    %p73 = por %p71, %p72
    %s74 = ssub.s32 %s14, %s21
    %p75 = scmp.eq.s32.totalorder %s74, 0
    %s77 = sadd.s32 %s76, 1
    %s78 = scalar_select %p75, %s76, %s77
    %p81 = pneg %p75
    %p82 = scmp.eq.s32.totalorder %s14, 1
    %p83 = por %p81, %p82
    %p84 = scmp.ne.s32.totalorder %s76, %s79
    %p85 = scmp.eq.s32.totalorder %s14, 0
    %p86 = por %p84, %p85
    %p87 = scmp.ne.s32.totalorder %s76, %s79
    %p88 = scmp.eq.s32.totalorder %s19, 1
    %p89 = por %p87, %p88
    %p90 = scmp.ne.s32.totalorder %s79, %s80
    %p91 = scmp.eq.s32.totalorder %s19, 0
    %p92 = por %p90, %p91
    %p93 = scmp.ne.s32.totalorder %s79, %s80
    %p94 = scmp.eq.s32.totalorder %s20, 1
    %p95 = por %p93, %p94
    %p97 = scmp.ne.s32.totalorder %s80, %s96
    %p98 = scmp.eq.s32.totalorder %s20, 0
    %p99 = por %p97, %p98
    %s101 = sadd.s32 %s100, 1
    %p104 = scmp.eq.s32.totalorder %s14, 1
    %p105 = scmp.ne.s32.totalorder %s100, %s102
    %p106 = scmp.eq.s32.totalorder %s14, 0
    %p107 = por %p105, %p106
    %p108 = scmp.ne.s32.totalorder %s100, %s102
    %p109 = scmp.eq.s32.totalorder %s19, 1
    %p110 = por %p108, %p109
    %p111 = scmp.ne.s32.totalorder %s102, %s103
    %p112 = scmp.eq.s32.totalorder %s19, 0
    %p113 = por %p111, %p112
    %p114 = scmp.ne.s32.totalorder %s102, %s103
    %p115 = scmp.eq.s32.totalorder %s20, 1
    %p116 = por %p114, %p115
    %p118 = scmp.ne.s32.totalorder %s103, %s117
    %p119 = scmp.eq.s32.totalorder %s20, 0
    %p120 = por %p118, %p119
    %s122 = sadd.s32 %s121, 1
    %p125 = scmp.eq.s32.totalorder %s14, 1
    %p126 = scmp.ne.s32.totalorder %s121, %s123
    %p127 = scmp.eq.s32.totalorder %s14, 0
    %p128 = por %p126, %p127
    %p129 = scmp.ne.s32.totalorder %s121, %s123
    %p130 = scmp.eq.s32.totalorder %s19, 1
    %p131 = por %p129, %p130
    %p132 = scmp.ne.s32.totalorder %s123, %s124
    %p133 = scmp.eq.s32.totalorder %s19, 0
    %p134 = por %p132, %p133
    %p135 = scmp.ne.s32.totalorder %s123, %s124
    %p136 = scmp.eq.s32.totalorder %s20, 1
    %p137 = por %p135, %p136
    %p139 = scmp.ne.s32.totalorder %s124, %s138
    %p140 = scmp.eq.s32.totalorder %s20, 0
    %p141 = por %p139, %p140
    %s143 = sadd.s32 %s142, 1
    %p146 = scmp.eq.s32.totalorder %s14, 1
    %p147 = scmp.ne.s32.totalorder %s142, %s144
    %p148 = scmp.eq.s32.totalorder %s14, 0
    %p149 = por %p147, %p148
    %p150 = scmp.ne.s32.totalorder %s142, %s144
    %p151 = scmp.eq.s32.totalorder %s19, 1
    %p152 = por %p150, %p151
    %p153 = scmp.ne.s32.totalorder %s144, %s145
    %p154 = scmp.eq.s32.totalorder %s19, 0
    %p155 = por %p153, %p154
    %p156 = scmp.ne.s32.totalorder %s144, %s145
    %p157 = scmp.eq.s32.totalorder %s20, 1
    %p158 = por %p156, %p157
    %p160 = scmp.ne.s32.totalorder %s145, %s159
    %p161 = scmp.eq.s32.totalorder %s20, 0
    %p162 = por %p160, %p161
    %s164 = sadd.s32 %s163, 1
    %p167 = scmp.eq.s32.totalorder %s14, 1
    %p168 = scmp.ne.s32.totalorder %s163, %s165
    %p169 = scmp.eq.s32.totalorder %s14, 0
    %p170 = por %p168, %p169
    %p171 = scmp.ne.s32.totalorder %s163, %s165
    %p172 = scmp.eq.s32.totalorder %s19, 1
    %p173 = por %p171, %p172
    %p174 = scmp.ne.s32.totalorder %s165, %s166
    %p175 = scmp.eq.s32.totalorder %s19, 0
    %p176 = por %p174, %p175
    %p177 = scmp.ne.s32.totalorder %s165, %s166
    %p178 = scmp.eq.s32.totalorder %s20, 1
    %p179 = por %p177, %p178
    %p181 = scmp.ne.s32.totalorder %s166, %s180
    %p182 = scmp.eq.s32.totalorder %s20, 0
    %p183 = por %p181, %p182
    %s185 = sadd.s32 %s184, 1
    %p188 = scmp.eq.s32.totalorder %s14, 1
    %p189 = scmp.ne.s32.totalorder %s184, %s186
    %p190 = scmp.eq.s32.totalorder %s14, 0
    %p191 = por %p189, %p190
    %p192 = scmp.ne.s32.totalorder %s184, %s186
    %p193 = scmp.eq.s32.totalorder %s19, 1
    %p194 = por %p192, %p193
    %p195 = scmp.ne.s32.totalorder %s186, %s187
    %p196 = scmp.eq.s32.totalorder %s19, 0
    %p197 = por %p195, %p196
    %p198 = scmp.ne.s32.totalorder %s186, %s187
    %p199 = scmp.eq.s32.totalorder %s20, 1
    %p200 = por %p198, %p199
    %p202 = scmp.ne.s32.totalorder %s187, %s201
    %p203 = scmp.eq.s32.totalorder %s20, 0
    %p204 = por %p202, %p203
    %s205 = ssub.s32 %s14, %s21
    %p206 = scmp.eq.s32.totalorder %s205, 0
    %s208 = sadd.s32 %s207, 1
    %s209 = scalar_select %p206, %s207, %s208
    %p212 = pneg %p206
    %p213 = scmp.eq.s32.totalorder %s14, 1
    %p214 = por %p212, %p213
    %p215 = scmp.ne.s32.totalorder %s207, %s210
    %p216 = scmp.eq.s32.totalorder %s14, 0
    %p217 = por %p215, %p216
    %p218 = scmp.ne.s32.totalorder %s207, %s210
    %p219 = scmp.eq.s32.totalorder %s19, 1
    %p220 = por %p218, %p219
    %p221 = scmp.ne.s32.totalorder %s210, %s211
    %p222 = scmp.eq.s32.totalorder %s19, 0
    %p223 = por %p221, %p222
    %p224 = scmp.ne.s32.totalorder %s210, %s211
    %p225 = scmp.eq.s32.totalorder %s20, 1
    %p226 = por %p224, %p225
    %p228 = scmp.ne.s32.totalorder %s211, %s227
    %p229 = scmp.eq.s32.totalorder %s20, 0
    %p230 = por %p228, %p229
    %p231 = scmp.le.s32.totalorder 1, %s14
    %p232 = scmp.lt.s32.totalorder %s14, 3
    %p233 = pnand %p231, %p232
    %p234 = pneg %p233
    // Predicated region
    $region9: #{tpu_custom_call.1} parent=5 // pred_check
      _
    $region10: #{tpu_custom_call.1} parent=5 // pred_check_branch
      %236 = sbr.rel (%p233) target = $region12
    $region11: #{tpu_custom_call.1} parent=5 // pred_region
      %s237 = ssub.s32 %s14, 1
      // Predicated region
      $region13: #{tpu_custom_call.1} parent=11 // pred_check
        %p238 = pneg %p113
      $region14: #{tpu_custom_call.1} parent=11 // pred_check_branch
        %240 = sbr.rel (%p238) target = $region16
      $region15: #{tpu_custom_call.1} parent=11 // pred_region
        _
      $region16: #{tpu_custom_call.1} parent=11 // pred_fallthru
        _
      // Predicated region
      $region17: #{tpu_custom_call.1} parent=11 // pred_check
        %p241 = pneg %p134
      $region18: #{tpu_custom_call.1} parent=11 // pred_check_branch
        %243 = sbr.rel (%p241) target = $region20
      $region19: #{tpu_custom_call.1} parent=11 // pred_region
        _
      $region20: #{tpu_custom_call.1} parent=11 // pred_fallthru
        _
      // Predicated region
      $region21: #{tpu_custom_call.1} parent=11 // pred_check
        %p244 = pneg %p155
      $region22: #{tpu_custom_call.1} parent=11 // pred_check_branch
        %246 = sbr.rel (%p244) target = $region24
      $region23: #{tpu_custom_call.1} parent=11 // pred_region
        _
      $region24: #{tpu_custom_call.1} parent=11 // pred_fallthru
        _
      // Predicated region
      $region25: #{tpu_custom_call.1} parent=11 // pred_check
        %p247 = pneg %p176
      $region26: #{tpu_custom_call.1} parent=11 // pred_check_branch
        %249 = sbr.rel (%p247) target = $region28
      $region27: #{tpu_custom_call.1} parent=11 // pred_region
        _
      $region28: #{tpu_custom_call.1} parent=11 // pred_fallthru
        _
      // Predicated region
      $region29: #{tpu_custom_call.1} parent=11 // pred_check
        %p250 = pneg %p197
      $region30: #{tpu_custom_call.1} parent=11 // pred_check_branch
        %252 = sbr.rel (%p250) target = $region32
      $region31: #{tpu_custom_call.1} parent=11 // pred_region
        _
      $region32: #{tpu_custom_call.1} parent=11 // pred_fallthru
        _
    $region12: #{tpu_custom_call.1} parent=5 // pred_fallthru
      _
    %p253 = scmp.lt.s32.totalorder %s14, 2
    // Predicated region
    $region33: #{tpu_custom_call.1} parent=5 // pred_check
      %p254 = pneg %p253
    $region34: #{tpu_custom_call.1} parent=5 // pred_check_branch
      %256 = sbr.rel (%p254) target = $region36
    $region35: #{tpu_custom_call.1} parent=5 // pred_region
      // Predicated region
      $region37: #{tpu_custom_call.1} parent=35 // pred_check
        %p257 = pneg %p34
      $region38: #{tpu_custom_call.1} parent=35 // pred_check_branch
        %259 = sbr.rel (%p257) target = $region40
      $region39: #{tpu_custom_call.1} parent=35 // pred_region
        %s260 = smul.u32 16, %s14
        %p261 = scmp.lt.s32.totalorder %s260, 31
        %s262 = scalar_select %p261, %s260, 31
        %s263 = smul.addr %s262, 8
        %s264 = scalar_lea.vmem %s0, %s263
        %s265 = smul.u32 16, %s14
      $region40: #{tpu_custom_call.1} parent=35 // pred_fallthru
        _
      // Predicated region
      $region41: #{tpu_custom_call.1} parent=35 // pred_check
        %p266 = pneg %p60
      $region42: #{tpu_custom_call.1} parent=35 // pred_check_branch
        %268 = sbr.rel (%p266) target = $region44
      $region43: #{tpu_custom_call.1} parent=35 // pred_region
        %s269 = smul.u32 16, %s14
        %p270 = scmp.lt.s32.totalorder %s269, 31
        %s271 = scalar_select %p270, %s269, 31
        %s272 = smul.addr %s271, 8
        %s273 = scalar_lea.vmem %s1, %s272
        %s274 = smul.u32 16, %s14
      $region44: #{tpu_custom_call.1} parent=35 // pred_fallthru
        _
      // Predicated region
      $region45: #{tpu_custom_call.1} parent=35 // pred_check
        %p275 = pneg %p86
      $region46: #{tpu_custom_call.1} parent=35 // pred_check_branch
        %277 = sbr.rel (%p275) target = $region48
      $region47: #{tpu_custom_call.1} parent=35 // pred_region
        %s278 = smul.u32 16, %s14
        %p279 = scmp.lt.s32.totalorder %s278, 31
        %s280 = scalar_select %p279, %s278, 31
        %s281 = smul.addr %s280, 8
        %s282 = scalar_lea.vmem %s2, %s281
        %s283 = smul.u32 16, %s14
      $region48: #{tpu_custom_call.1} parent=35 // pred_fallthru
        _
    $region36: #{tpu_custom_call.1} parent=5 // pred_fallthru
      _
    %p284 = scmp.le.s32.totalorder 1, %s14
    %p285 = scmp.lt.s32.totalorder %s14, 3
    %p286 = pnand %p284, %p285
    %p287 = pneg %p286
    // Predicated region
    $region49: #{tpu_custom_call.1} parent=5 // pred_check
      _
    $region50: #{tpu_custom_call.1} parent=5 // pred_check_branch
      %289 = sbr.rel (%p286) target = $region52
    $region51: #{tpu_custom_call.1} parent=5 // pred_region
      %s290 = ssub.s32 %s14, 1
      %s291 = smul.u32 16, %s19
      %p292 = scmp.lt.s32.totalorder %s291, 31
      %s293 = scalar_select %p292, %s291, 31
      %s294 = smul.addr %s293, 8
      %s295 = scalar_lea.vmem %s0, %s294
      %p296 = pneg %p40
      %p297 = pneg %p37
      %s298 = smul.u32 16, %s19
      %p299 = scmp.lt.s32.totalorder %s298, 31
      %s300 = scalar_select %p299, %s298, 31
      %s301 = smul.addr %s300, 8
      %s302 = scalar_lea.vmem %s1, %s301
      %p303 = pneg %p66
      %p304 = pneg %p63
      %s305 = smul.u32 16, %s19
      %p306 = scmp.lt.s32.totalorder %s305, 31
      %s307 = scalar_select %p306, %s305, 31
      %s308 = smul.addr %s307, 8
      %s309 = scalar_lea.vmem %s2, %s308
      %p310 = pneg %p92
      %p311 = pneg %p89
      %p312 = pneg %p113
      %p313 = pneg %p110
      %p314 = pneg %p134
      %p315 = pneg %p131
      %p316 = pneg %p155
      %p317 = pneg %p152
      %p318 = pneg %p176
      %p319 = pneg %p173
      %p320 = pneg %p197
      %p321 = pneg %p194
      %p322 = pneg %p223
      %p323 = pneg %p220
      %s324 = smul.u32 16, %s19
      %p325 = scmp.lt.s32.totalorder %s324, 31
      %s326 = scalar_select %p325, %s324, 31
      %s327 = smul.addr %s326, 8
      %s328 = scalar_lea.vmem %s8, %s327
      %s329 = smul.u32 16, %s19
      %p330 = scmp.lt.s32.totalorder %s329, 31
      %s331 = scalar_select %p330, %s329, 31
      %s332 = smul.addr %s331, 8
      %s333 = scalar_lea.vmem %s0, %s332
      %s334 = smul.u32 16, %s19
      %s335 = smul.u32 16, %s19
      %p336 = scmp.lt.s32.totalorder %s335, 31
      %s337 = scalar_select %p336, %s335, 31
      %s338 = smul.addr %s337, 8
      %s339 = scalar_lea.vmem %s1, %s338
      %s340 = smul.u32 16, %s19
      %s341 = smul.u32 16, %s19
      %p342 = scmp.lt.s32.totalorder %s341, 31
      %s343 = scalar_select %p342, %s341, 31
      %s344 = smul.addr %s343, 8
      %s345 = scalar_lea.vmem %s2, %s344
      %s346 = smul.u32 16, %s19
      %s347 = smul.u32 16, %s19
      %p348 = scmp.lt.s32.totalorder %s347, 31
      %s349 = scalar_select %p348, %s347, 31
      %s350 = smul.addr %s349, 8
      %s351 = scalar_lea.vmem %s8, %s350
      %s352 = smul.u32 16, %s19
      %v353 = vld [vmem:[%s339] sm:$0xff]
      %v354 = vld [vmem:[%s339 + $0x8] sm:$0xff]
      %v355 = vld [vmem:[%s339 + $0x10] sm:$0xff]
      %v356 = vld [vmem:[%s339 + $0x18] sm:$0xff]
      %v357 = vld [vmem:[%s339 + $0x20] sm:$0xff]
      %v358 = vld [vmem:[%s339 + $0x28] sm:$0xff]
      %v359 = vld [vmem:[%s339 + $0x30] sm:$0xff]
      %v360 = vld [vmem:[%s339 + $0x38] sm:$0xff]
      %v361 = vld [vmem:[%s339 + $0x40] sm:$0xff]
      %v362 = vld [vmem:[%s339 + $0x48] sm:$0xff]
      %v363 = vld [vmem:[%s339 + $0x50] sm:$0xff]
      %v364 = vld [vmem:[%s339 + $0x58] sm:$0xff]
      %v365 = vld [vmem:[%s339 + $0x60] sm:$0xff]
      %v366 = vld [vmem:[%s339 + $0x68] sm:$0xff]
      %v367 = vld [vmem:[%s339 + $0x70] sm:$0xff]
      %v368 = vld [vmem:[%s339 + $0x78] sm:$0xff]
      %v369 = vld [vmem:[%s5] sm:$0xff]
      %vm370 = vcmask 64512
      %v372 = vsel %vm370, %v353, 0
      %v375 = vsel %vm370, %v354, 0
      %v378 = vsel %vm370, %v355, 0
      %v381 = vsel %vm370, %v356, 0
      %v384 = vsel %vm370, %v357, 0
      %v387 = vsel %vm370, %v358, 0
      %v390 = vsel %vm370, %v359, 0
      %v393 = vsel %vm370, %v360, 0
      %v396 = vsel %vm370, %v361, 0
      %v399 = vsel %vm370, %v362, 0
      %v402 = vsel %vm370, %v363, 0
      %v405 = vsel %vm370, %v364, 0
      %v408 = vsel %vm370, %v365, 0
      %v411 = vsel %vm370, %v366, 0
      %v414 = vsel %vm370, %v367, 0
      %v417 = vsel %vm370, %v368, 0
      %419 = vmatprep.subr.mxu0 0.0
      %420 = vmatpush1.msra.mxu0 0.0
      %421 = vmatprep.subr.mxu0 0.0
      %422 = vmatpush1.msra.mxu0 0.0
      %423 = vmatprep.subr.mxu0 0.0
      %424 = vmatpush1.msra.mxu0 0.0
      %425 = vmatprep.subr.mxu0 0.0
      %426 = vmatpush1.msra.mxu0 0.0
      %427 = vmatprep.subr.mxu0 0.0
      %428 = vmatpush1.msra.mxu0 0.0
      %429 = vmatprep.subr.mxu0 0.0
      %430 = vmatpush1.msra.mxu0 0.0
      %431 = vmatprep.subr.mxu0 0.0
      %432 = vmatpush1.msra.mxu0 0.0
      %433 = vmatprep.subr.mxu0 0.0
      %434 = vmatpush1.msra.mxu0 0.0
      %435 = vmatprep.subr.mxu0 0.0
      %436 = vmatpush1.msra.mxu0 0.0
      %437 = vmatprep.subr.mxu0 0.0
      %438 = vmatpush1.msra.mxu0 0.0
      %439 = vmatprep.subr.mxu0 0.0
      %440 = vmatpush1.msra.mxu0 0.0
      %441 = vmatprep.subr.mxu0 0.0
      %442 = vmatpush1.msra.mxu0 0.0
      %443 = vmatprep.subr.mxu0 0.0
      %444 = vmatpush1.msra.mxu0 0.0
      %445 = vmatprep.subr.mxu0 0.0
      %446 = vmatpush1.msra.mxu0 0.0
      %447 = vmatprep.subr.mxu0 0.0
      %448 = vmatpush1.msra.mxu0 0.0
      %449 = vmatprep.subr.mxu0 0.0
      %450 = vmatpush1.msra.mxu0 %v369
      %451 = vmatprep.subr.mxu0 0.0
      %452 = vmatpush2.msra.mxu0 0.0
      %453 = vmatprep.subr.mxu0 0.0
      %454 = vmatpush2.msra.mxu0 0.0
      %455 = vmatprep.subr.mxu0 0.0
      %456 = vmatpush2.msra.mxu0 0.0
      %457 = vmatprep.subr.mxu0 0.0
      %458 = vmatpush2.msra.mxu0 0.0
      %459 = vmatprep.subr.mxu0 0.0
      %460 = vmatpush2.msra.mxu0 0.0
      %461 = vmatprep.subr.mxu0 0.0
      %462 = vmatpush2.msra.mxu0 0.0
      %463 = vmatprep.subr.mxu0 0.0
      %464 = vmatpush2.msra.mxu0 0.0
      %465 = vmatprep.subr.mxu0 0.0
      %466 = vmatpush2.msra.mxu0 0.0
      %467 = vmatprep.subr.mxu0 0.0
      %468 = vmatpush2.msra.mxu0 0.0
      %469 = vmatprep.subr.mxu0 0.0
      %470 = vmatpush2.msra.mxu0 0.0
      %471 = vmatprep.subr.mxu0 0.0
      %472 = vmatpush2.msra.mxu0 0.0
      %473 = vmatprep.subr.mxu0 0.0
      %474 = vmatpush2.msra.mxu0 0.0
      %475 = vmatprep.subr.mxu0 0.0
      %476 = vmatpush2.msra.mxu0 0.0
      %477 = vmatprep.subr.mxu0 0.0
      %478 = vmatpush2.msra.mxu0 0.0
      %479 = vmatprep.subr.mxu0 0.0
      %480 = vmatpush2.msra.mxu0 0.0
      %481 = vmatprep.subr.mxu0 0.0
      %482 = vmatpush2.msra.mxu0 0.0
      %483 = vmatprep.mubr.f32.mxu0 0.0
      %484 = vmatmul.mubr.f32.gmra.mxu0 %v372
      %v485 = vpop.f32.mrf.mxu0
      %v486 = vadd.f32 0.0, %v485
      %v487 = vpop.f32.mrf.mxu0
      %488 = vmatprep.mubr.f32.mxu0 0.0
      %489 = vmatmul.mubr.f32.gmra.mxu0 %v375
      %v490 = vpop.f32.mrf.mxu0
      %v491 = vadd.f32 0.0, %v490
      %v492 = vpop.f32.mrf.mxu0
      %493 = vmatprep.mubr.f32.mxu0 0.0
      %494 = vmatmul.mubr.f32.gmra.mxu0 %v378
      %v495 = vpop.f32.mrf.mxu0
      %v496 = vadd.f32 0.0, %v495
      %v497 = vpop.f32.mrf.mxu0
      %498 = vmatprep.mubr.f32.mxu0 0.0
      %499 = vmatmul.mubr.f32.gmra.mxu0 %v381
      %v500 = vpop.f32.mrf.mxu0
      %v501 = vadd.f32 0.0, %v500
      %v502 = vpop.f32.mrf.mxu0
      %503 = vmatprep.mubr.f32.mxu0 0.0
      %504 = vmatmul.mubr.f32.gmra.mxu0 %v384
      %v505 = vpop.f32.mrf.mxu0
      %v506 = vadd.f32 0.0, %v505
      %v507 = vpop.f32.mrf.mxu0
      %508 = vmatprep.mubr.f32.mxu0 0.0
      %509 = vmatmul.mubr.f32.gmra.mxu0 %v387
      %v510 = vpop.f32.mrf.mxu0
      %v511 = vadd.f32 0.0, %v510
      %v512 = vpop.f32.mrf.mxu0
      %513 = vmatprep.mubr.f32.mxu0 0.0
      %514 = vmatmul.mubr.f32.gmra.mxu0 %v390
      %v515 = vpop.f32.mrf.mxu0
      %v516 = vadd.f32 0.0, %v515
      %v517 = vpop.f32.mrf.mxu0
      %518 = vmatprep.mubr.f32.mxu0 0.0
      %519 = vmatmul.mubr.f32.gmra.mxu0 %v393
      %v520 = vpop.f32.mrf.mxu0
      %v521 = vadd.f32 0.0, %v520
      %v522 = vpop.f32.mrf.mxu0
      %523 = vmatprep.mubr.f32.mxu0 0.0
      %524 = vmatmul.mubr.f32.gmra.mxu0 %v396
      %v525 = vpop.f32.mrf.mxu0
      %v526 = vadd.f32 0.0, %v525
      %v527 = vpop.f32.mrf.mxu0
      %528 = vmatprep.mubr.f32.mxu0 0.0
      %529 = vmatmul.mubr.f32.gmra.mxu0 %v399
      %v530 = vpop.f32.mrf.mxu0
      %v531 = vadd.f32 0.0, %v530
      %v532 = vpop.f32.mrf.mxu0
      %533 = vmatprep.mubr.f32.mxu0 0.0
      %534 = vmatmul.mubr.f32.gmra.mxu0 %v402
      %v535 = vpop.f32.mrf.mxu0
      %v536 = vadd.f32 0.0, %v535
      %v537 = vpop.f32.mrf.mxu0
      %538 = vmatprep.mubr.f32.mxu0 0.0
      %539 = vmatmul.mubr.f32.gmra.mxu0 %v405
      %v540 = vpop.f32.mrf.mxu0
      %v541 = vadd.f32 0.0, %v540
      %v542 = vpop.f32.mrf.mxu0
      %543 = vmatprep.mubr.f32.mxu0 0.0
      %544 = vmatmul.mubr.f32.gmra.mxu0 %v408
      %v545 = vpop.f32.mrf.mxu0
      %v546 = vadd.f32 0.0, %v545
      %v547 = vpop.f32.mrf.mxu0
      %548 = vmatprep.mubr.f32.mxu0 0.0
      %549 = vmatmul.mubr.f32.gmra.mxu0 %v411
      %v550 = vpop.f32.mrf.mxu0
      %v551 = vadd.f32 0.0, %v550
      %v552 = vpop.f32.mrf.mxu0
      %553 = vmatprep.mubr.f32.mxu0 0.0
      %554 = vmatmul.mubr.f32.gmra.mxu0 %v414
      %v555 = vpop.f32.mrf.mxu0
      %v556 = vadd.f32 0.0, %v555
      %v557 = vpop.f32.mrf.mxu0
      %558 = vmatprep.mubr.f32.mxu0 0.0
      %559 = vmatmul.mubr.f32.gmra.mxu0 %v417
      %v560 = vpop.f32.mrf.mxu0
      %v561 = vadd.f32 0.0, %v560
      %v562 = vpop.f32.mrf.mxu0
      %563 = vdwg.mxu0
      %v564 = vld [vmem:[%s333] sm:$0xff]
      %v565 = vld [vmem:[%s333 + $0x8] sm:$0xff]
      %v566 = vld [vmem:[%s333 + $0x10] sm:$0xff]
      %v567 = vld [vmem:[%s333 + $0x18] sm:$0xff]
      %v568 = vld [vmem:[%s333 + $0x20] sm:$0xff]
      %v569 = vld [vmem:[%s333 + $0x28] sm:$0xff]
      %v570 = vld [vmem:[%s333 + $0x30] sm:$0xff]
      %v571 = vld [vmem:[%s333 + $0x38] sm:$0xff]
      %v572 = vld [vmem:[%s333 + $0x40] sm:$0xff]
      %v573 = vld [vmem:[%s333 + $0x48] sm:$0xff]
      %v574 = vld [vmem:[%s333 + $0x50] sm:$0xff]
      %v575 = vld [vmem:[%s333 + $0x58] sm:$0xff]
      %v576 = vld [vmem:[%s333 + $0x60] sm:$0xff]
      %v577 = vld [vmem:[%s333 + $0x68] sm:$0xff]
      %v578 = vld [vmem:[%s333 + $0x70] sm:$0xff]
      %v579 = vld [vmem:[%s333 + $0x78] sm:$0xff]
      %v580 = vld [vmem:[%s3] sm:$0xff]
      %v581 = vld [vmem:[%s3 + $0x8] sm:$0xff]
      %v582 = vld [vmem:[%s3 + $0x10] sm:$0xff]
      %v583 = vld [vmem:[%s3 + $0x18] sm:$0xff]
      %v584 = vld [vmem:[%s4] sm:$0x1]
      %v586 = vlaneseq
      %v587 = vshrl.u32 %v586, 7
      %v588 = vsub.s32 0, %v587
      %v589 = vrot.slane %v584, %v588
      %vm591 = vcmask 261120
      %v593 = vsel %vm591, %v564, 0
      %v596 = vsel %vm591, %v565, 0
      %v599 = vsel %vm591, %v566, 0
      %v602 = vsel %vm591, %v567, 0
      %v605 = vsel %vm591, %v568, 0
      %v608 = vsel %vm591, %v569, 0
      %v611 = vsel %vm591, %v570, 0
      %v614 = vsel %vm591, %v571, 0
      %v617 = vsel %vm591, %v572, 0
      %v620 = vsel %vm591, %v573, 0
      %v623 = vsel %vm591, %v574, 0
      %v626 = vsel %vm591, %v575, 0
      %v629 = vsel %vm591, %v576, 0
      %v632 = vsel %vm591, %v577, 0
      %v635 = vsel %vm591, %v578, 0
      %v638 = vsel %vm591, %v579, 0
      %640 = vmatprep.subr.mxu0 0.0
      %641 = vmatpush1.msra.mxu0 0.0
      %642 = vmatprep.subr.mxu0 0.0
      %643 = vmatpush1.msra.mxu0 0.0
      %644 = vmatprep.subr.mxu0 0.0
      %645 = vmatpush1.msra.mxu0 0.0
      %646 = vmatprep.subr.mxu0 0.0
      %647 = vmatpush1.msra.mxu0 0.0
      %648 = vmatprep.subr.mxu0 0.0
      %649 = vmatpush1.msra.mxu0 0.0
      %650 = vmatprep.subr.mxu0 0.0
      %651 = vmatpush1.msra.mxu0 0.0
      %652 = vmatprep.subr.mxu0 0.0
      %653 = vmatpush1.msra.mxu0 0.0
      %654 = vmatprep.subr.mxu0 0.0
      %655 = vmatpush1.msra.mxu0 0.0
      %656 = vmatprep.subr.mxu0 0.0
      %657 = vmatpush1.msra.mxu0 0.0
      %658 = vmatprep.subr.mxu0 0.0
      %659 = vmatpush1.msra.mxu0 0.0
      %660 = vmatprep.subr.mxu0 0.0
      %661 = vmatpush1.msra.mxu0 0.0
      %662 = vmatprep.subr.mxu0 0.0
      %663 = vmatpush1.msra.mxu0 0.0
      %664 = vmatprep.subr.mxu0 0.0
      %665 = vmatpush1.msra.mxu0 %v583
      %666 = vmatprep.subr.mxu0 0.0
      %667 = vmatpush1.msra.mxu0 %v582
      %668 = vmatprep.subr.mxu0 0.0
      %669 = vmatpush1.msra.mxu0 %v581
      %670 = vmatprep.subr.mxu0 0.0
      %671 = vmatpush1.msra.mxu0 %v580
      %672 = vmatprep.subr.mxu0 0.0
      %673 = vmatpush2.msra.mxu0 0.0
      %674 = vmatprep.subr.mxu0 0.0
      %675 = vmatpush2.msra.mxu0 0.0
      %676 = vmatprep.subr.mxu0 0.0
      %677 = vmatpush2.msra.mxu0 0.0
      %678 = vmatprep.subr.mxu0 0.0
      %679 = vmatpush2.msra.mxu0 0.0
      %680 = vmatprep.subr.mxu0 0.0
      %681 = vmatpush2.msra.mxu0 0.0
      %682 = vmatprep.subr.mxu0 0.0
      %683 = vmatpush2.msra.mxu0 0.0
      %684 = vmatprep.subr.mxu0 0.0
      %685 = vmatpush2.msra.mxu0 0.0
      %686 = vmatprep.subr.mxu0 0.0
      %687 = vmatpush2.msra.mxu0 0.0
      %688 = vmatprep.subr.mxu0 0.0
      %689 = vmatpush2.msra.mxu0 0.0
      %690 = vmatprep.subr.mxu0 0.0
      %691 = vmatpush2.msra.mxu0 0.0
      %692 = vmatprep.subr.mxu0 0.0
      %693 = vmatpush2.msra.mxu0 0.0
      %694 = vmatprep.subr.mxu0 0.0
      %695 = vmatpush2.msra.mxu0 0.0
      %696 = vmatprep.subr.mxu0 0.0
      %697 = vmatpush2.msra.mxu0 0.0
      %698 = vmatprep.subr.mxu0 0.0
      %699 = vmatpush2.msra.mxu0 0.0
      %700 = vmatprep.subr.mxu0 0.0
      %701 = vmatpush2.msra.mxu0 0.0
      %702 = vmatprep.subr.mxu0 0.0
      %703 = vmatpush2.msra.mxu0 0.0
      %704 = vmatprep.mubr.f32.mxu0 0.0
      %705 = vmatmul.mubr.f32.gmra.mxu0 %v593
      %v706 = vpop.f32.mrf.mxu0
      %v707 = vadd.f32 %v589, %v706
      %v708 = vpop.f32.mrf.mxu0
      %709 = vmatprep.mubr.f32.mxu0 0.0
      %710 = vmatmul.mubr.f32.gmra.mxu0 %v596
      %v711 = vpop.f32.mrf.mxu0
      %v712 = vadd.f32 %v589, %v711
      %v713 = vpop.f32.mrf.mxu0
      %714 = vmatprep.mubr.f32.mxu0 0.0
      %715 = vmatmul.mubr.f32.gmra.mxu0 %v599
      %v716 = vpop.f32.mrf.mxu0
      %v717 = vadd.f32 %v589, %v716
      %v718 = vpop.f32.mrf.mxu0
      %719 = vmatprep.mubr.f32.mxu0 0.0
      %720 = vmatmul.mubr.f32.gmra.mxu0 %v602
      %v721 = vpop.f32.mrf.mxu0
      %v722 = vadd.f32 %v589, %v721
      %v723 = vpop.f32.mrf.mxu0
      %724 = vmatprep.mubr.f32.mxu0 0.0
      %725 = vmatmul.mubr.f32.gmra.mxu0 %v605
      %v726 = vpop.f32.mrf.mxu0
      %v727 = vadd.f32 %v589, %v726
      %v728 = vpop.f32.mrf.mxu0
      %729 = vmatprep.mubr.f32.mxu0 0.0
      %730 = vmatmul.mubr.f32.gmra.mxu0 %v608
      %v731 = vpop.f32.mrf.mxu0
      %v732 = vadd.f32 %v589, %v731
      %v733 = vpop.f32.mrf.mxu0
      %734 = vmatprep.mubr.f32.mxu0 0.0
      %735 = vmatmul.mubr.f32.gmra.mxu0 %v611
      %v736 = vpop.f32.mrf.mxu0
      %v737 = vadd.f32 %v589, %v736
      %v738 = vpop.f32.mrf.mxu0
      %739 = vmatprep.mubr.f32.mxu0 0.0
      %740 = vmatmul.mubr.f32.gmra.mxu0 %v614
      %v741 = vpop.f32.mrf.mxu0
      %v742 = vadd.f32 %v589, %v741
      %v743 = vpop.f32.mrf.mxu0
      %744 = vmatprep.mubr.f32.mxu0 0.0
      %745 = vmatmul.mubr.f32.gmra.mxu0 %v617
      %v746 = vpop.f32.mrf.mxu0
      %v747 = vadd.f32 %v589, %v746
      %v748 = vpop.f32.mrf.mxu0
      %749 = vmatprep.mubr.f32.mxu0 0.0
      %750 = vmatmul.mubr.f32.gmra.mxu0 %v620
      %v751 = vpop.f32.mrf.mxu0
      %v752 = vadd.f32 %v589, %v751
      %v753 = vpop.f32.mrf.mxu0
      %754 = vmatprep.mubr.f32.mxu0 0.0
      %755 = vmatmul.mubr.f32.gmra.mxu0 %v623
      %v756 = vpop.f32.mrf.mxu0
      %v757 = vadd.f32 %v589, %v756
      %v758 = vpop.f32.mrf.mxu0
      %759 = vmatprep.mubr.f32.mxu0 0.0
      %760 = vmatmul.mubr.f32.gmra.mxu0 %v626
      %v761 = vpop.f32.mrf.mxu0
      %v762 = vadd.f32 %v589, %v761
      %v763 = vpop.f32.mrf.mxu0
      %764 = vmatprep.mubr.f32.mxu0 0.0
      %765 = vmatmul.mubr.f32.gmra.mxu0 %v629
      %v766 = vpop.f32.mrf.mxu0
      %v767 = vadd.f32 %v589, %v766
      %v768 = vpop.f32.mrf.mxu0
      %769 = vmatprep.mubr.f32.mxu0 0.0
      %770 = vmatmul.mubr.f32.gmra.mxu0 %v632
      %v771 = vpop.f32.mrf.mxu0
      %v772 = vadd.f32 %v589, %v771
      %v773 = vpop.f32.mrf.mxu0
      %774 = vmatprep.mubr.f32.mxu0 0.0
      %775 = vmatmul.mubr.f32.gmra.mxu0 %v635
      %v776 = vpop.f32.mrf.mxu0
      %v777 = vadd.f32 %v589, %v776
      %v778 = vpop.f32.mrf.mxu0
      %779 = vmatprep.mubr.f32.mxu0 0.0
      %780 = vmatmul.mubr.f32.gmra.mxu0 %v638
      %v781 = vpop.f32.mrf.mxu0
      %v782 = vadd.f32 %v589, %v781
      %v783 = vpop.f32.mrf.mxu0
      %784 = vdwg.mxu0
      %v785 = vsub.f32 0.0, %v707
      %v786 = vsub.f32 0.0, %v712
      %v787 = vsub.f32 0.0, %v717
      %v788 = vsub.f32 0.0, %v722
      %v789 = vsub.f32 0.0, %v727
      %v790 = vsub.f32 0.0, %v732
      %v791 = vsub.f32 0.0, %v737
      %v792 = vsub.f32 0.0, %v742
      %v793 = vsub.f32 0.0, %v747
      %v794 = vsub.f32 0.0, %v752
      %v795 = vsub.f32 0.0, %v757
      %v796 = vsub.f32 0.0, %v762
      %v797 = vsub.f32 0.0, %v767
      %v798 = vsub.f32 0.0, %v772
      %v799 = vsub.f32 0.0, %v777
      %v800 = vsub.f32 0.0, %v782
      %v801 = vmul.f32 %v785, 1.442695
      %v802 = vpow.pop %v801
      %v803 = vmul.f32 %v786, 1.442695
      %v804 = vpow.pop %v803
      %v805 = vmul.f32 %v787, 1.442695
      %v806 = vpow.pop %v805
      %v807 = vmul.f32 %v788, 1.442695
      %v808 = vpow.pop %v807
      %v809 = vmul.f32 %v789, 1.442695
      %v810 = vpow.pop %v809
      %v811 = vmul.f32 %v790, 1.442695
      %v812 = vpow.pop %v811
      %v813 = vmul.f32 %v791, 1.442695
      %v814 = vpow.pop %v813
      %v815 = vmul.f32 %v792, 1.442695
      %v816 = vpow.pop %v815
      %v817 = vmul.f32 %v793, 1.442695
      %v818 = vpow.pop %v817
      %v819 = vmul.f32 %v794, 1.442695
      %v820 = vpow.pop %v819
      %v821 = vmul.f32 %v795, 1.442695
      %v822 = vpow.pop %v821
      %v823 = vmul.f32 %v796, 1.442695
      %v824 = vpow.pop %v823
      %v825 = vmul.f32 %v797, 1.442695
      %v826 = vpow.pop %v825
      %v827 = vmul.f32 %v798, 1.442695
      %v828 = vpow.pop %v827
      %v829 = vmul.f32 %v799, 1.442695
      %v830 = vpow.pop %v829
      %v831 = vmul.f32 %v800, 1.442695
      %v832 = vpow.pop %v831
      %v833 = vadd.f32 %v802, 1.0
      %v834 = vadd.f32 %v804, 1.0
      %v835 = vadd.f32 %v806, 1.0
      %v836 = vadd.f32 %v808, 1.0
      %v837 = vadd.f32 %v810, 1.0
      %v838 = vadd.f32 %v812, 1.0
      %v839 = vadd.f32 %v814, 1.0
      %v840 = vadd.f32 %v816, 1.0
      %v841 = vadd.f32 %v818, 1.0
      %v842 = vadd.f32 %v820, 1.0
      %v843 = vadd.f32 %v822, 1.0
      %v844 = vadd.f32 %v824, 1.0
      %v845 = vadd.f32 %v826, 1.0
      %v846 = vadd.f32 %v828, 1.0
      %v847 = vadd.f32 %v830, 1.0
      %v848 = vadd.f32 %v832, 1.0
      %v849 = vrcp.pop %v833
      %v850 = vmul.f32 1.0, %v849
      %v851 = vrcp.pop %v834
      %v852 = vmul.f32 1.0, %v851
      %v853 = vrcp.pop %v835
      %v854 = vmul.f32 1.0, %v853
      %v855 = vrcp.pop %v836
      %v856 = vmul.f32 1.0, %v855
      %v857 = vrcp.pop %v837
      %v858 = vmul.f32 1.0, %v857
      %v859 = vrcp.pop %v838
      %v860 = vmul.f32 1.0, %v859
      %v861 = vrcp.pop %v839
      %v862 = vmul.f32 1.0, %v861
      %v863 = vrcp.pop %v840
      %v864 = vmul.f32 1.0, %v863
      %v865 = vrcp.pop %v841
      %v866 = vmul.f32 1.0, %v865
      %v867 = vrcp.pop %v842
      %v868 = vmul.f32 1.0, %v867
      %v869 = vrcp.pop %v843
      %v870 = vmul.f32 1.0, %v869
      %v871 = vrcp.pop %v844
      %v872 = vmul.f32 1.0, %v871
      %v873 = vrcp.pop %v845
      %v874 = vmul.f32 1.0, %v873
      %v875 = vrcp.pop %v846
      %v876 = vmul.f32 1.0, %v875
      %v877 = vrcp.pop %v847
      %v878 = vmul.f32 1.0, %v877
      %v879 = vrcp.pop %v848
      %v880 = vmul.f32 1.0, %v879
      %v881 = vmul.f32 %v707, %v850
      %v882 = vmul.f32 %v712, %v852
      %v883 = vmul.f32 %v717, %v854
      %v884 = vmul.f32 %v722, %v856
      %v885 = vmul.f32 %v727, %v858
      %v886 = vmul.f32 %v732, %v860
      %v887 = vmul.f32 %v737, %v862
      %v888 = vmul.f32 %v742, %v864
      %v889 = vmul.f32 %v747, %v866
      %v890 = vmul.f32 %v752, %v868
      %v891 = vmul.f32 %v757, %v870
      %v892 = vmul.f32 %v762, %v872
      %v893 = vmul.f32 %v767, %v874
      %v894 = vmul.f32 %v772, %v876
      %v895 = vmul.f32 %v777, %v878
      %v896 = vmul.f32 %v782, %v880
      %v897 = vmul.f32 %v881, %v486
      %v898 = vmul.f32 %v882, %v491
      %v899 = vmul.f32 %v883, %v496
      %v900 = vmul.f32 %v884, %v501
      %v901 = vmul.f32 %v885, %v506
      %v902 = vmul.f32 %v886, %v511
      %v903 = vmul.f32 %v887, %v516
      %v904 = vmul.f32 %v888, %v521
      %v905 = vmul.f32 %v889, %v526
      %v906 = vmul.f32 %v890, %v531
      %v907 = vmul.f32 %v891, %v536
      %v908 = vmul.f32 %v892, %v541
      %v909 = vmul.f32 %v893, %v546
      %v910 = vmul.f32 %v894, %v551
      %v911 = vmul.f32 %v895, %v556
      %v912 = vmul.f32 %v896, %v561
      %v913 = vld [vmem:[%s345] sm:$0xff]
      %v914 = vld [vmem:[%s345 + $0x8] sm:$0xff]
      %v915 = vld [vmem:[%s345 + $0x10] sm:$0xff]
      %v916 = vld [vmem:[%s345 + $0x18] sm:$0xff]
      %v917 = vld [vmem:[%s345 + $0x20] sm:$0xff]
      %v918 = vld [vmem:[%s345 + $0x28] sm:$0xff]
      %v919 = vld [vmem:[%s345 + $0x30] sm:$0xff]
      %v920 = vld [vmem:[%s345 + $0x38] sm:$0xff]
      %v921 = vld [vmem:[%s345 + $0x40] sm:$0xff]
      %v922 = vld [vmem:[%s345 + $0x48] sm:$0xff]
      %v923 = vld [vmem:[%s345 + $0x50] sm:$0xff]
      %v924 = vld [vmem:[%s345 + $0x58] sm:$0xff]
      %v925 = vld [vmem:[%s345 + $0x60] sm:$0xff]
      %v926 = vld [vmem:[%s345 + $0x68] sm:$0xff]
      %v927 = vld [vmem:[%s345 + $0x70] sm:$0xff]
      %v928 = vld [vmem:[%s345 + $0x78] sm:$0xff]
      %v929 = vld [vmem:[%s6] sm:$0xff]
      %v930 = vld [vmem:[%s6 + $0x8] sm:$0xff]
      %v931 = vld [vmem:[%s6 + $0x10] sm:$0xff]
      %v932 = vld [vmem:[%s6 + $0x18] sm:$0xff]
      %v934 = vsel %vm591, %v913, 0
      %v937 = vsel %vm591, %v914, 0
      %v940 = vsel %vm591, %v915, 0
      %v943 = vsel %vm591, %v916, 0
      %v946 = vsel %vm591, %v917, 0
      %v949 = vsel %vm591, %v918, 0
      %v952 = vsel %vm591, %v919, 0
      %v955 = vsel %vm591, %v920, 0
      %v958 = vsel %vm591, %v921, 0
      %v961 = vsel %vm591, %v922, 0
      %v964 = vsel %vm591, %v923, 0
      %v967 = vsel %vm591, %v924, 0
      %v970 = vsel %vm591, %v925, 0
      %v973 = vsel %vm591, %v926, 0
      %v976 = vsel %vm591, %v927, 0
      %v979 = vsel %vm591, %v928, 0
      %981 = vmatprep.subr.mxu0 0.0
      %982 = vmatpush1.msra.mxu0 0.0
      %983 = vmatprep.subr.mxu0 0.0
      %984 = vmatpush1.msra.mxu0 0.0
      %985 = vmatprep.subr.mxu0 0.0
      %986 = vmatpush1.msra.mxu0 0.0
      %987 = vmatprep.subr.mxu0 0.0
      %988 = vmatpush1.msra.mxu0 0.0
      %989 = vmatprep.subr.mxu0 0.0
      %990 = vmatpush1.msra.mxu0 0.0
      %991 = vmatprep.subr.mxu0 0.0
      %992 = vmatpush1.msra.mxu0 0.0
      %993 = vmatprep.subr.mxu0 0.0
      %994 = vmatpush1.msra.mxu0 0.0
      %995 = vmatprep.subr.mxu0 0.0
      %996 = vmatpush1.msra.mxu0 0.0
      %997 = vmatprep.subr.mxu0 0.0
      %998 = vmatpush1.msra.mxu0 0.0
      %999 = vmatprep.subr.mxu0 0.0
      %1000 = vmatpush1.msra.mxu0 0.0
      %1001 = vmatprep.subr.mxu0 0.0
      %1002 = vmatpush1.msra.mxu0 0.0
      %1003 = vmatprep.subr.mxu0 0.0
      %1004 = vmatpush1.msra.mxu0 0.0
      %1005 = vmatprep.subr.mxu0 0.0
      %1006 = vmatpush1.msra.mxu0 %v932
      %1007 = vmatprep.subr.mxu0 0.0
      %1008 = vmatpush1.msra.mxu0 %v931
      %1009 = vmatprep.subr.mxu0 0.0
      %1010 = vmatpush1.msra.mxu0 %v930
      %1011 = vmatprep.subr.mxu0 0.0
      %1012 = vmatpush1.msra.mxu0 %v929
      %1013 = vmatprep.subr.mxu0 0.0
      %1014 = vmatpush2.msra.mxu0 0.0
      %1015 = vmatprep.subr.mxu0 0.0
      %1016 = vmatpush2.msra.mxu0 0.0
      %1017 = vmatprep.subr.mxu0 0.0
      %1018 = vmatpush2.msra.mxu0 0.0
      %1019 = vmatprep.subr.mxu0 0.0
      %1020 = vmatpush2.msra.mxu0 0.0
      %1021 = vmatprep.subr.mxu0 0.0
      %1022 = vmatpush2.msra.mxu0 0.0
      %1023 = vmatprep.subr.mxu0 0.0
      %1024 = vmatpush2.msra.mxu0 0.0
      %1025 = vmatprep.subr.mxu0 0.0
      %1026 = vmatpush2.msra.mxu0 0.0
      %1027 = vmatprep.subr.mxu0 0.0
      %1028 = vmatpush2.msra.mxu0 0.0
      %1029 = vmatprep.subr.mxu0 0.0
      %1030 = vmatpush2.msra.mxu0 0.0
      %1031 = vmatprep.subr.mxu0 0.0
      %1032 = vmatpush2.msra.mxu0 0.0
      %1033 = vmatprep.subr.mxu0 0.0
      %1034 = vmatpush2.msra.mxu0 0.0
      %1035 = vmatprep.subr.mxu0 0.0
      %1036 = vmatpush2.msra.mxu0 0.0
      %1037 = vmatprep.subr.mxu0 0.0
      %1038 = vmatpush2.msra.mxu0 0.0
      %1039 = vmatprep.subr.mxu0 0.0
      %1040 = vmatpush2.msra.mxu0 0.0
      %1041 = vmatprep.subr.mxu0 0.0
      %1042 = vmatpush2.msra.mxu0 0.0
      %1043 = vmatprep.subr.mxu0 0.0
      %1044 = vmatpush2.msra.mxu0 0.0
      %1045 = vmatprep.mubr.f32.mxu0 0.0
      %1046 = vmatmul.mubr.f32.gmra.mxu0 %v934
      %v1047 = vpop.f32.mrf.mxu0
      %v1048 = vadd.f32 0.0, %v1047
      %v1049 = vpop.f32.mrf.mxu0
      %1050 = vmatprep.mubr.f32.mxu0 0.0
      %1051 = vmatmul.mubr.f32.gmra.mxu0 %v937
      %v1052 = vpop.f32.mrf.mxu0
      %v1053 = vadd.f32 0.0, %v1052
      %v1054 = vpop.f32.mrf.mxu0
      %1055 = vmatprep.mubr.f32.mxu0 0.0
      %1056 = vmatmul.mubr.f32.gmra.mxu0 %v940
      %v1057 = vpop.f32.mrf.mxu0
      %v1058 = vadd.f32 0.0, %v1057
      %v1059 = vpop.f32.mrf.mxu0
      %1060 = vmatprep.mubr.f32.mxu0 0.0
      %1061 = vmatmul.mubr.f32.gmra.mxu0 %v943
      %v1062 = vpop.f32.mrf.mxu0
      %v1063 = vadd.f32 0.0, %v1062
      %v1064 = vpop.f32.mrf.mxu0
      %1065 = vmatprep.mubr.f32.mxu0 0.0
      %1066 = vmatmul.mubr.f32.gmra.mxu0 %v946
      %v1067 = vpop.f32.mrf.mxu0
      %v1068 = vadd.f32 0.0, %v1067
      %v1069 = vpop.f32.mrf.mxu0
      %1070 = vmatprep.mubr.f32.mxu0 0.0
      %1071 = vmatmul.mubr.f32.gmra.mxu0 %v949
      %v1072 = vpop.f32.mrf.mxu0
      %v1073 = vadd.f32 0.0, %v1072
      %v1074 = vpop.f32.mrf.mxu0
      %1075 = vmatprep.mubr.f32.mxu0 0.0
      %1076 = vmatmul.mubr.f32.gmra.mxu0 %v952
      %v1077 = vpop.f32.mrf.mxu0
      %v1078 = vadd.f32 0.0, %v1077
      %v1079 = vpop.f32.mrf.mxu0
      %1080 = vmatprep.mubr.f32.mxu0 0.0
      %1081 = vmatmul.mubr.f32.gmra.mxu0 %v955
      %v1082 = vpop.f32.mrf.mxu0
      %v1083 = vadd.f32 0.0, %v1082
      %v1084 = vpop.f32.mrf.mxu0
      %1085 = vmatprep.mubr.f32.mxu0 0.0
      %1086 = vmatmul.mubr.f32.gmra.mxu0 %v958
      %v1087 = vpop.f32.mrf.mxu0
      %v1088 = vadd.f32 0.0, %v1087
      %v1089 = vpop.f32.mrf.mxu0
      %1090 = vmatprep.mubr.f32.mxu0 0.0
      %1091 = vmatmul.mubr.f32.gmra.mxu0 %v961
      %v1092 = vpop.f32.mrf.mxu0
      %v1093 = vadd.f32 0.0, %v1092
      %v1094 = vpop.f32.mrf.mxu0
      %1095 = vmatprep.mubr.f32.mxu0 0.0
      %1096 = vmatmul.mubr.f32.gmra.mxu0 %v964
      %v1097 = vpop.f32.mrf.mxu0
      %v1098 = vadd.f32 0.0, %v1097
      %v1099 = vpop.f32.mrf.mxu0
      %1100 = vmatprep.mubr.f32.mxu0 0.0
      %1101 = vmatmul.mubr.f32.gmra.mxu0 %v967
      %v1102 = vpop.f32.mrf.mxu0
      %v1103 = vadd.f32 0.0, %v1102
      %v1104 = vpop.f32.mrf.mxu0
      %1105 = vmatprep.mubr.f32.mxu0 0.0
      %1106 = vmatmul.mubr.f32.gmra.mxu0 %v970
      %v1107 = vpop.f32.mrf.mxu0
      %v1108 = vadd.f32 0.0, %v1107
      %v1109 = vpop.f32.mrf.mxu0
      %1110 = vmatprep.mubr.f32.mxu0 0.0
      %1111 = vmatmul.mubr.f32.gmra.mxu0 %v973
      %v1112 = vpop.f32.mrf.mxu0
      %v1113 = vadd.f32 0.0, %v1112
      %v1114 = vpop.f32.mrf.mxu0
      %1115 = vmatprep.mubr.f32.mxu0 0.0
      %1116 = vmatmul.mubr.f32.gmra.mxu0 %v976
      %v1117 = vpop.f32.mrf.mxu0
      %v1118 = vadd.f32 0.0, %v1117
      %v1119 = vpop.f32.mrf.mxu0
      %1120 = vmatprep.mubr.f32.mxu0 0.0
      %1121 = vmatmul.mubr.f32.gmra.mxu0 %v979
      %v1122 = vpop.f32.mrf.mxu0
      %v1123 = vadd.f32 0.0, %v1122
      %v1124 = vpop.f32.mrf.mxu0
      %1125 = vdwg.mxu0
      %v1126 = vld [vmem:[%s7] sm:$0xff]
      %v1127 = vld [vmem:[%s7 + $0x8] sm:$0xff]
      %v1128 = vld [vmem:[%s7 + $0x10] sm:$0xff]
      %v1129 = vld [vmem:[%s7 + $0x18] sm:$0xff]
      %v1130 = vld [vmem:[%s7 + $0x20] sm:$0xff]
      %v1131 = vld [vmem:[%s7 + $0x28] sm:$0xff]
      %v1132 = vld [vmem:[%s7 + $0x30] sm:$0xff]
      %v1133 = vld [vmem:[%s7 + $0x38] sm:$0xff]
      %v1135 = vsel %vm591, %v897, 0
      %v1138 = vsel %vm591, %v898, 0
      %v1141 = vsel %vm591, %v899, 0
      %v1144 = vsel %vm591, %v900, 0
      %v1147 = vsel %vm591, %v901, 0
      %v1150 = vsel %vm591, %v902, 0
      %v1153 = vsel %vm591, %v903, 0
      %v1156 = vsel %vm591, %v904, 0
      %v1159 = vsel %vm591, %v905, 0
      %v1162 = vsel %vm591, %v906, 0
      %v1165 = vsel %vm591, %v907, 0
      %v1168 = vsel %vm591, %v908, 0
      %v1171 = vsel %vm591, %v909, 0
      %v1174 = vsel %vm591, %v910, 0
      %v1177 = vsel %vm591, %v911, 0
      %v1180 = vsel %vm591, %v912, 0
      %1182 = vmatprep.subr.mxu0 0.0
      %1183 = vmatpush1.msra.mxu0 0.0
      %1184 = vmatprep.subr.mxu0 0.0
      %1185 = vmatpush1.msra.mxu0 0.0
      %1186 = vmatprep.subr.mxu0 0.0
      %1187 = vmatpush1.msra.mxu0 0.0
      %1188 = vmatprep.subr.mxu0 0.0
      %1189 = vmatpush1.msra.mxu0 0.0
      %1190 = vmatprep.subr.mxu0 0.0
      %1191 = vmatpush1.msra.mxu0 0.0
      %1192 = vmatprep.subr.mxu0 0.0
      %1193 = vmatpush1.msra.mxu0 0.0
      %1194 = vmatprep.subr.mxu0 0.0
      %1195 = vmatpush1.msra.mxu0 0.0
      %1196 = vmatprep.subr.mxu0 0.0
      %1197 = vmatpush1.msra.mxu0 0.0
      %1198 = vmatprep.subr.mxu0 0.0
      %1199 = vmatpush1.msra.mxu0 0.0
      %1200 = vmatprep.subr.mxu0 0.0
      %1201 = vmatpush1.msra.mxu0 0.0
      %1202 = vmatprep.subr.mxu0 0.0
      %1203 = vmatpush1.msra.mxu0 0.0
      %1204 = vmatprep.subr.mxu0 0.0
      %1205 = vmatpush1.msra.mxu0 0.0
      %1206 = vmatprep.subr.mxu0 %v1133
      %1207 = vmatpush1.msra.mxu0 %v1132
      %1208 = vmatprep.subr.mxu0 %v1131
      %1209 = vmatpush1.msra.mxu0 %v1130
      %1210 = vmatprep.subr.mxu0 %v1129
      %1211 = vmatpush1.msra.mxu0 %v1128
      %1212 = vmatprep.subr.mxu0 %v1127
      %1213 = vmatpush1.msra.mxu0 %v1126
      %1214 = vmatprep.subr.mxu0 0.0
      %1215 = vmatpush2.msra.mxu0 0.0
      %1216 = vmatprep.subr.mxu0 0.0
      %1217 = vmatpush2.msra.mxu0 0.0
      %1218 = vmatprep.subr.mxu0 0.0
      %1219 = vmatpush2.msra.mxu0 0.0
      %1220 = vmatprep.subr.mxu0 0.0
      %1221 = vmatpush2.msra.mxu0 0.0
      %1222 = vmatprep.subr.mxu0 0.0
      %1223 = vmatpush2.msra.mxu0 0.0
      %1224 = vmatprep.subr.mxu0 0.0
      %1225 = vmatpush2.msra.mxu0 0.0
      %1226 = vmatprep.subr.mxu0 0.0
      %1227 = vmatpush2.msra.mxu0 0.0
      %1228 = vmatprep.subr.mxu0 0.0
      %1229 = vmatpush2.msra.mxu0 0.0
      %1230 = vmatprep.subr.mxu0 0.0
      %1231 = vmatpush2.msra.mxu0 0.0
      %1232 = vmatprep.subr.mxu0 0.0
      %1233 = vmatpush2.msra.mxu0 0.0
      %1234 = vmatprep.subr.mxu0 0.0
      %1235 = vmatpush2.msra.mxu0 0.0
      %1236 = vmatprep.subr.mxu0 0.0
      %1237 = vmatpush2.msra.mxu0 0.0
      %1238 = vmatprep.subr.mxu0 0.0
      %1239 = vmatpush2.msra.mxu0 0.0
      %1240 = vmatprep.subr.mxu0 0.0
      %1241 = vmatpush2.msra.mxu0 0.0
      %1242 = vmatprep.subr.mxu0 0.0
      %1243 = vmatpush2.msra.mxu0 0.0
      %1244 = vmatprep.subr.mxu0 0.0
      %1245 = vmatpush2.msra.mxu0 0.0
      %1246 = vmatprep.mubr.f32.mxu0 0.0
      %1247 = vmatmul.mubr.f32.gmra.mxu0 %v1135
      %v1248 = vpop.f32.mrf.mxu0
      %v1249 = vadd.f32 0.0, %v1248
      %v1250 = vpop.f32.mrf.mxu0
      %v1251 = vadd.f32 0.0, %v1250
      %1252 = vmatprep.mubr.f32.mxu0 0.0
      %1253 = vmatmul.mubr.f32.gmra.mxu0 %v1138
      %v1254 = vpop.f32.mrf.mxu0
      %v1255 = vadd.f32 0.0, %v1254
      %v1256 = vpop.f32.mrf.mxu0
      %v1257 = vadd.f32 0.0, %v1256
      %1258 = vmatprep.mubr.f32.mxu0 0.0
      %1259 = vmatmul.mubr.f32.gmra.mxu0 %v1141
      %v1260 = vpop.f32.mrf.mxu0
      %v1261 = vadd.f32 0.0, %v1260
      %v1262 = vpop.f32.mrf.mxu0
      %v1263 = vadd.f32 0.0, %v1262
      %1264 = vmatprep.mubr.f32.mxu0 0.0
      %1265 = vmatmul.mubr.f32.gmra.mxu0 %v1144
      %v1266 = vpop.f32.mrf.mxu0
      %v1267 = vadd.f32 0.0, %v1266
      %v1268 = vpop.f32.mrf.mxu0
      %v1269 = vadd.f32 0.0, %v1268
      %1270 = vmatprep.mubr.f32.mxu0 0.0
      %1271 = vmatmul.mubr.f32.gmra.mxu0 %v1147
      %v1272 = vpop.f32.mrf.mxu0
      %v1273 = vadd.f32 0.0, %v1272
      %v1274 = vpop.f32.mrf.mxu0
      %v1275 = vadd.f32 0.0, %v1274
      %1276 = vmatprep.mubr.f32.mxu0 0.0
      %1277 = vmatmul.mubr.f32.gmra.mxu0 %v1150
      %v1278 = vpop.f32.mrf.mxu0
      %v1279 = vadd.f32 0.0, %v1278
      %v1280 = vpop.f32.mrf.mxu0
      %v1281 = vadd.f32 0.0, %v1280
      %1282 = vmatprep.mubr.f32.mxu0 0.0
      %1283 = vmatmul.mubr.f32.gmra.mxu0 %v1153
      %v1284 = vpop.f32.mrf.mxu0
      %v1285 = vadd.f32 0.0, %v1284
      %v1286 = vpop.f32.mrf.mxu0
      %v1287 = vadd.f32 0.0, %v1286
      %1288 = vmatprep.mubr.f32.mxu0 0.0
      %1289 = vmatmul.mubr.f32.gmra.mxu0 %v1156
      %v1290 = vpop.f32.mrf.mxu0
      %v1291 = vadd.f32 0.0, %v1290
      %v1292 = vpop.f32.mrf.mxu0
      %v1293 = vadd.f32 0.0, %v1292
      %1294 = vmatprep.mubr.f32.mxu0 0.0
      %1295 = vmatmul.mubr.f32.gmra.mxu0 %v1159
      %v1296 = vpop.f32.mrf.mxu0
      %v1297 = vadd.f32 0.0, %v1296
      %v1298 = vpop.f32.mrf.mxu0
      %v1299 = vadd.f32 0.0, %v1298
      %1300 = vmatprep.mubr.f32.mxu0 0.0
      %1301 = vmatmul.mubr.f32.gmra.mxu0 %v1162
      %v1302 = vpop.f32.mrf.mxu0
      %v1303 = vadd.f32 0.0, %v1302
      %v1304 = vpop.f32.mrf.mxu0
      %v1305 = vadd.f32 0.0, %v1304
      %1306 = vmatprep.mubr.f32.mxu0 0.0
      %1307 = vmatmul.mubr.f32.gmra.mxu0 %v1165
      %v1308 = vpop.f32.mrf.mxu0
      %v1309 = vadd.f32 0.0, %v1308
      %v1310 = vpop.f32.mrf.mxu0
      %v1311 = vadd.f32 0.0, %v1310
      %1312 = vmatprep.mubr.f32.mxu0 0.0
      %1313 = vmatmul.mubr.f32.gmra.mxu0 %v1168
      %v1314 = vpop.f32.mrf.mxu0
      %v1315 = vadd.f32 0.0, %v1314
      %v1316 = vpop.f32.mrf.mxu0
      %v1317 = vadd.f32 0.0, %v1316
      %1318 = vmatprep.mubr.f32.mxu0 0.0
      %1319 = vmatmul.mubr.f32.gmra.mxu0 %v1171
      %v1320 = vpop.f32.mrf.mxu0
      %v1321 = vadd.f32 0.0, %v1320
      %v1322 = vpop.f32.mrf.mxu0
      %v1323 = vadd.f32 0.0, %v1322
      %1324 = vmatprep.mubr.f32.mxu0 0.0
      %1325 = vmatmul.mubr.f32.gmra.mxu0 %v1174
      %v1326 = vpop.f32.mrf.mxu0
      %v1327 = vadd.f32 0.0, %v1326
      %v1328 = vpop.f32.mrf.mxu0
      %v1329 = vadd.f32 0.0, %v1328
      %1330 = vmatprep.mubr.f32.mxu0 0.0
      %1331 = vmatmul.mubr.f32.gmra.mxu0 %v1177
      %v1332 = vpop.f32.mrf.mxu0
      %v1333 = vadd.f32 0.0, %v1332
      %v1334 = vpop.f32.mrf.mxu0
      %v1335 = vadd.f32 0.0, %v1334
      %1336 = vmatprep.mubr.f32.mxu0 0.0
      %1337 = vmatmul.mubr.f32.gmra.mxu0 %v1180
      %v1338 = vpop.f32.mrf.mxu0
      %v1339 = vadd.f32 0.0, %v1338
      %v1340 = vpop.f32.mrf.mxu0
      %v1341 = vadd.f32 0.0, %v1340
      %1342 = vdwg.mxu0
      %1344 = vset.pattern.permute.xlu0 0
      %1345 = vperm.xlu0 %1344, %v1048
      %v1346 = vpop.permute.xlu0 %1345
      %1349 = vset.pattern.permute.xlu0 0
      %1350 = vperm.xlu0 %1349, %v1053
      %v1351 = vpop.permute.xlu0 %1350
      %1354 = vset.pattern.permute.xlu0 0
      %1355 = vperm.xlu0 %1354, %v1058
      %v1356 = vpop.permute.xlu0 %1355
      %1359 = vset.pattern.permute.xlu0 0
      %1360 = vperm.xlu0 %1359, %v1063
      %v1361 = vpop.permute.xlu0 %1360
      %1364 = vset.pattern.permute.xlu0 0
      %1365 = vperm.xlu0 %1364, %v1068
      %v1366 = vpop.permute.xlu0 %1365
      %1369 = vset.pattern.permute.xlu0 0
      %1370 = vperm.xlu0 %1369, %v1073
      %v1371 = vpop.permute.xlu0 %1370
      %1374 = vset.pattern.permute.xlu0 0
      %1375 = vperm.xlu0 %1374, %v1078
      %v1376 = vpop.permute.xlu0 %1375
      %1379 = vset.pattern.permute.xlu0 0
      %1380 = vperm.xlu0 %1379, %v1083
      %v1381 = vpop.permute.xlu0 %1380
      %1384 = vset.pattern.permute.xlu0 0
      %1385 = vperm.xlu0 %1384, %v1088
      %v1386 = vpop.permute.xlu0 %1385
      %1389 = vset.pattern.permute.xlu0 0
      %1390 = vperm.xlu0 %1389, %v1093
      %v1391 = vpop.permute.xlu0 %1390
      %1394 = vset.pattern.permute.xlu0 0
      %1395 = vperm.xlu0 %1394, %v1098
      %v1396 = vpop.permute.xlu0 %1395
      %1399 = vset.pattern.permute.xlu0 0
      %1400 = vperm.xlu0 %1399, %v1103
      %v1401 = vpop.permute.xlu0 %1400
      %1404 = vset.pattern.permute.xlu0 0
      %1405 = vperm.xlu0 %1404, %v1108
      %v1406 = vpop.permute.xlu0 %1405
      %1409 = vset.pattern.permute.xlu0 0
      %1410 = vperm.xlu0 %1409, %v1113
      %v1411 = vpop.permute.xlu0 %1410
      %1414 = vset.pattern.permute.xlu0 0
      %1415 = vperm.xlu0 %1414, %v1118
      %v1416 = vpop.permute.xlu0 %1415
      %1419 = vset.pattern.permute.xlu0 0
      %1420 = vperm.xlu0 %1419, %v1123
      %v1421 = vpop.permute.xlu0 %1420
      %v1423 = vmul.f32 %v1346, %v1249
      %v1424 = vmul.f32 %v1351, %v1255
      %v1425 = vmul.f32 %v1356, %v1261
      %v1426 = vmul.f32 %v1361, %v1267
      %v1427 = vmul.f32 %v1366, %v1273
      %v1428 = vmul.f32 %v1371, %v1279
      %v1429 = vmul.f32 %v1376, %v1285
      %v1430 = vmul.f32 %v1381, %v1291
      %v1431 = vmul.f32 %v1386, %v1297
      %v1432 = vmul.f32 %v1391, %v1303
      %v1433 = vmul.f32 %v1396, %v1309
      %v1434 = vmul.f32 %v1401, %v1315
      %v1435 = vmul.f32 %v1406, %v1321
      %v1436 = vmul.f32 %v1411, %v1327
      %v1437 = vmul.f32 %v1416, %v1333
      %v1438 = vmul.f32 %v1421, %v1339
      %v1439 = vadd.f32 %v1423, 0.0
      %v1440 = vadd.f32 %v1424, 0.0
      %v1441 = vadd.f32 %v1425, 0.0
      %v1442 = vadd.f32 %v1426, 0.0
      %v1443 = vadd.f32 %v1427, 0.0
      %v1444 = vadd.f32 %v1428, 0.0
      %v1445 = vadd.f32 %v1429, 0.0
      %v1446 = vadd.f32 %v1430, 0.0
      %v1447 = vadd.f32 %v1431, 0.0
      %v1448 = vadd.f32 %v1432, 0.0
      %v1449 = vadd.f32 %v1433, 0.0
      %v1450 = vadd.f32 %v1434, 0.0
      %v1451 = vadd.f32 %v1435, 0.0
      %v1452 = vadd.f32 %v1436, 0.0
      %v1453 = vadd.f32 %v1437, 0.0
      %v1454 = vadd.f32 %v1438, 0.0
      %1455 = vset.pattern.permute.xlu0 1
      %1456 = vperm.xlu0 %1455, %v1048
      %v1457 = vpop.permute.xlu0 %1456
      %1459 = vset.pattern.permute.xlu0 1
      %1460 = vperm.xlu0 %1459, %v1053
      %v1461 = vpop.permute.xlu0 %1460
      %1463 = vset.pattern.permute.xlu0 1
      %1464 = vperm.xlu0 %1463, %v1058
      %v1465 = vpop.permute.xlu0 %1464
      %1467 = vset.pattern.permute.xlu0 1
      %1468 = vperm.xlu0 %1467, %v1063
      %v1469 = vpop.permute.xlu0 %1468
      %1471 = vset.pattern.permute.xlu0 1
      %1472 = vperm.xlu0 %1471, %v1068
      %v1473 = vpop.permute.xlu0 %1472
      %1475 = vset.pattern.permute.xlu0 1
      %1476 = vperm.xlu0 %1475, %v1073
      %v1477 = vpop.permute.xlu0 %1476
      %1479 = vset.pattern.permute.xlu0 1
      %1480 = vperm.xlu0 %1479, %v1078
      %v1481 = vpop.permute.xlu0 %1480
      %1483 = vset.pattern.permute.xlu0 1
      %1484 = vperm.xlu0 %1483, %v1083
      %v1485 = vpop.permute.xlu0 %1484
      %1487 = vset.pattern.permute.xlu0 1
      %1488 = vperm.xlu0 %1487, %v1088
      %v1489 = vpop.permute.xlu0 %1488
      %1491 = vset.pattern.permute.xlu0 1
      %1492 = vperm.xlu0 %1491, %v1093
      %v1493 = vpop.permute.xlu0 %1492
      %1495 = vset.pattern.permute.xlu0 1
      %1496 = vperm.xlu0 %1495, %v1098
      %v1497 = vpop.permute.xlu0 %1496
      %1499 = vset.pattern.permute.xlu0 1
      %1500 = vperm.xlu0 %1499, %v1103
      %v1501 = vpop.permute.xlu0 %1500
      %1503 = vset.pattern.permute.xlu0 1
      %1504 = vperm.xlu0 %1503, %v1108
      %v1505 = vpop.permute.xlu0 %1504
      %1507 = vset.pattern.permute.xlu0 1
      %1508 = vperm.xlu0 %1507, %v1113
      %v1509 = vpop.permute.xlu0 %1508
      %1511 = vset.pattern.permute.xlu0 1
      %1512 = vperm.xlu0 %1511, %v1118
      %v1513 = vpop.permute.xlu0 %1512
      %1515 = vset.pattern.permute.xlu0 1
      %1516 = vperm.xlu0 %1515, %v1123
      %v1517 = vpop.permute.xlu0 %1516
      %v1519 = vmul.f32 %v1457, %v1249
      %v1520 = vmul.f32 %v1461, %v1255
      %v1521 = vmul.f32 %v1465, %v1261
      %v1522 = vmul.f32 %v1469, %v1267
      %v1523 = vmul.f32 %v1473, %v1273
      %v1524 = vmul.f32 %v1477, %v1279
      %v1525 = vmul.f32 %v1481, %v1285
      %v1526 = vmul.f32 %v1485, %v1291
      %v1527 = vmul.f32 %v1489, %v1297
      %v1528 = vmul.f32 %v1493, %v1303
      %v1529 = vmul.f32 %v1497, %v1309
      %v1530 = vmul.f32 %v1501, %v1315
      %v1531 = vmul.f32 %v1505, %v1321
      %v1532 = vmul.f32 %v1509, %v1327
      %v1533 = vmul.f32 %v1513, %v1333
      %v1534 = vmul.f32 %v1517, %v1339
      %1551 = vrot.lane.b32.xlu0 %v1519, 96
      %v1552 = vpop.permute.xlu0 %1551
      %1553 = vrot.lane.b32.xlu0 %v1520, 96
      %v1554 = vpop.permute.xlu0 %1553
      %1555 = vrot.lane.b32.xlu0 %v1521, 96
      %v1556 = vpop.permute.xlu0 %1555
      %1557 = vrot.lane.b32.xlu0 %v1522, 96
      %v1558 = vpop.permute.xlu0 %1557
      %1559 = vrot.lane.b32.xlu0 %v1523, 96
      %v1560 = vpop.permute.xlu0 %1559
      %1561 = vrot.lane.b32.xlu0 %v1524, 96
      %v1562 = vpop.permute.xlu0 %1561
      %1563 = vrot.lane.b32.xlu0 %v1525, 96
      %v1564 = vpop.permute.xlu0 %1563
      %1565 = vrot.lane.b32.xlu0 %v1526, 96
      %v1566 = vpop.permute.xlu0 %1565
      %1567 = vrot.lane.b32.xlu0 %v1527, 96
      %v1568 = vpop.permute.xlu0 %1567
      %1569 = vrot.lane.b32.xlu0 %v1528, 96
      %v1570 = vpop.permute.xlu0 %1569
      %1571 = vrot.lane.b32.xlu0 %v1529, 96
      %v1572 = vpop.permute.xlu0 %1571
      %1573 = vrot.lane.b32.xlu0 %v1530, 96
      %v1574 = vpop.permute.xlu0 %1573
      %1575 = vrot.lane.b32.xlu0 %v1531, 96
      %v1576 = vpop.permute.xlu0 %1575
      %1577 = vrot.lane.b32.xlu0 %v1532, 96
      %v1578 = vpop.permute.xlu0 %1577
      %1579 = vrot.lane.b32.xlu0 %v1533, 96
      %v1580 = vpop.permute.xlu0 %1579
      %1581 = vrot.lane.b32.xlu0 %v1534, 96
      %v1582 = vpop.permute.xlu0 %1581
      %v1599 = vadd.f32 %v1439, %v1552
      %v1600 = vadd.f32 %v1440, %v1554
      %v1601 = vadd.f32 %v1441, %v1556
      %v1602 = vadd.f32 %v1442, %v1558
      %v1603 = vadd.f32 %v1443, %v1560
      %v1604 = vadd.f32 %v1444, %v1562
      %v1605 = vadd.f32 %v1445, %v1564
      %v1606 = vadd.f32 %v1446, %v1566
      %v1607 = vadd.f32 %v1447, %v1568
      %v1608 = vadd.f32 %v1448, %v1570
      %v1609 = vadd.f32 %v1449, %v1572
      %v1610 = vadd.f32 %v1450, %v1574
      %v1611 = vadd.f32 %v1451, %v1576
      %v1612 = vadd.f32 %v1452, %v1578
      %v1613 = vadd.f32 %v1453, %v1580
      %v1614 = vadd.f32 %v1454, %v1582
      %1615 = vset.pattern.permute.xlu0 2
      %1616 = vperm.xlu0 %1615, %v1048
      %v1617 = vpop.permute.xlu0 %1616
      %1619 = vset.pattern.permute.xlu0 2
      %1620 = vperm.xlu0 %1619, %v1053
      %v1621 = vpop.permute.xlu0 %1620
      %1623 = vset.pattern.permute.xlu0 2
      %1624 = vperm.xlu0 %1623, %v1058
      %v1625 = vpop.permute.xlu0 %1624
      %1627 = vset.pattern.permute.xlu0 2
      %1628 = vperm.xlu0 %1627, %v1063
      %v1629 = vpop.permute.xlu0 %1628
      %1631 = vset.pattern.permute.xlu0 2
      %1632 = vperm.xlu0 %1631, %v1068
      %v1633 = vpop.permute.xlu0 %1632
      %1635 = vset.pattern.permute.xlu0 2
      %1636 = vperm.xlu0 %1635, %v1073
      %v1637 = vpop.permute.xlu0 %1636
      %1639 = vset.pattern.permute.xlu0 2
      %1640 = vperm.xlu0 %1639, %v1078
      %v1641 = vpop.permute.xlu0 %1640
      %1643 = vset.pattern.permute.xlu0 2
      %1644 = vperm.xlu0 %1643, %v1083
      %v1645 = vpop.permute.xlu0 %1644
      %1647 = vset.pattern.permute.xlu0 2
      %1648 = vperm.xlu0 %1647, %v1088
      %v1649 = vpop.permute.xlu0 %1648
      %1651 = vset.pattern.permute.xlu0 2
      %1652 = vperm.xlu0 %1651, %v1093
      %v1653 = vpop.permute.xlu0 %1652
      %1655 = vset.pattern.permute.xlu0 2
      %1656 = vperm.xlu0 %1655, %v1098
      %v1657 = vpop.permute.xlu0 %1656
      %1659 = vset.pattern.permute.xlu0 2
      %1660 = vperm.xlu0 %1659, %v1103
      %v1661 = vpop.permute.xlu0 %1660
      %1663 = vset.pattern.permute.xlu0 2
      %1664 = vperm.xlu0 %1663, %v1108
      %v1665 = vpop.permute.xlu0 %1664
      %1667 = vset.pattern.permute.xlu0 2
      %1668 = vperm.xlu0 %1667, %v1113
      %v1669 = vpop.permute.xlu0 %1668
      %1671 = vset.pattern.permute.xlu0 2
      %1672 = vperm.xlu0 %1671, %v1118
      %v1673 = vpop.permute.xlu0 %1672
      %1675 = vset.pattern.permute.xlu0 2
      %1676 = vperm.xlu0 %1675, %v1123
      %v1677 = vpop.permute.xlu0 %1676
      %v1679 = vmul.f32 %v1617, %v1249
      %v1680 = vmul.f32 %v1621, %v1255
      %v1681 = vmul.f32 %v1625, %v1261
      %v1682 = vmul.f32 %v1629, %v1267
      %v1683 = vmul.f32 %v1633, %v1273
      %v1684 = vmul.f32 %v1637, %v1279
      %v1685 = vmul.f32 %v1641, %v1285
      %v1686 = vmul.f32 %v1645, %v1291
      %v1687 = vmul.f32 %v1649, %v1297
      %v1688 = vmul.f32 %v1653, %v1303
      %v1689 = vmul.f32 %v1657, %v1309
      %v1690 = vmul.f32 %v1661, %v1315
      %v1691 = vmul.f32 %v1665, %v1321
      %v1692 = vmul.f32 %v1669, %v1327
      %v1693 = vmul.f32 %v1673, %v1333
      %v1694 = vmul.f32 %v1677, %v1339
      %1711 = vrot.lane.b32.xlu0 %v1679, 64
      %v1712 = vpop.permute.xlu0 %1711
      %1713 = vrot.lane.b32.xlu0 %v1680, 64
      %v1714 = vpop.permute.xlu0 %1713
      %1715 = vrot.lane.b32.xlu0 %v1681, 64
      %v1716 = vpop.permute.xlu0 %1715
      %1717 = vrot.lane.b32.xlu0 %v1682, 64
      %v1718 = vpop.permute.xlu0 %1717
      %1719 = vrot.lane.b32.xlu0 %v1683, 64
      %v1720 = vpop.permute.xlu0 %1719
      %1721 = vrot.lane.b32.xlu0 %v1684, 64
      %v1722 = vpop.permute.xlu0 %1721
      %1723 = vrot.lane.b32.xlu0 %v1685, 64
      %v1724 = vpop.permute.xlu0 %1723
      %1725 = vrot.lane.b32.xlu0 %v1686, 64
      %v1726 = vpop.permute.xlu0 %1725
      %1727 = vrot.lane.b32.xlu0 %v1687, 64
      %v1728 = vpop.permute.xlu0 %1727
      %1729 = vrot.lane.b32.xlu0 %v1688, 64
      %v1730 = vpop.permute.xlu0 %1729
      %1731 = vrot.lane.b32.xlu0 %v1689, 64
      %v1732 = vpop.permute.xlu0 %1731
      %1733 = vrot.lane.b32.xlu0 %v1690, 64
      %v1734 = vpop.permute.xlu0 %1733
      %1735 = vrot.lane.b32.xlu0 %v1691, 64
      %v1736 = vpop.permute.xlu0 %1735
      %1737 = vrot.lane.b32.xlu0 %v1692, 64
      %v1738 = vpop.permute.xlu0 %1737
      %1739 = vrot.lane.b32.xlu0 %v1693, 64
      %v1740 = vpop.permute.xlu0 %1739
      %1741 = vrot.lane.b32.xlu0 %v1694, 64
      %v1742 = vpop.permute.xlu0 %1741
      %v1759 = vadd.f32 %v1599, %v1712
      %v1760 = vadd.f32 %v1600, %v1714
      %v1761 = vadd.f32 %v1601, %v1716
      %v1762 = vadd.f32 %v1602, %v1718
      %v1763 = vadd.f32 %v1603, %v1720
      %v1764 = vadd.f32 %v1604, %v1722
      %v1765 = vadd.f32 %v1605, %v1724
      %v1766 = vadd.f32 %v1606, %v1726
      %v1767 = vadd.f32 %v1607, %v1728
      %v1768 = vadd.f32 %v1608, %v1730
      %v1769 = vadd.f32 %v1609, %v1732
      %v1770 = vadd.f32 %v1610, %v1734
      %v1771 = vadd.f32 %v1611, %v1736
      %v1772 = vadd.f32 %v1612, %v1738
      %v1773 = vadd.f32 %v1613, %v1740
      %v1774 = vadd.f32 %v1614, %v1742
      %1775 = vset.pattern.permute.xlu0 3
      %1776 = vperm.xlu0 %1775, %v1048
      %v1777 = vpop.permute.xlu0 %1776
      %1779 = vset.pattern.permute.xlu0 3
      %1780 = vperm.xlu0 %1779, %v1053
      %v1781 = vpop.permute.xlu0 %1780
      %1783 = vset.pattern.permute.xlu0 3
      %1784 = vperm.xlu0 %1783, %v1058
      %v1785 = vpop.permute.xlu0 %1784
      %1787 = vset.pattern.permute.xlu0 3
      %1788 = vperm.xlu0 %1787, %v1063
      %v1789 = vpop.permute.xlu0 %1788
      %1791 = vset.pattern.permute.xlu0 3
      %1792 = vperm.xlu0 %1791, %v1068
      %v1793 = vpop.permute.xlu0 %1792
      %1795 = vset.pattern.permute.xlu0 3
      %1796 = vperm.xlu0 %1795, %v1073
      %v1797 = vpop.permute.xlu0 %1796
      %1799 = vset.pattern.permute.xlu0 3
      %1800 = vperm.xlu0 %1799, %v1078
      %v1801 = vpop.permute.xlu0 %1800
      %1803 = vset.pattern.permute.xlu0 3
      %1804 = vperm.xlu0 %1803, %v1083
      %v1805 = vpop.permute.xlu0 %1804
      %1807 = vset.pattern.permute.xlu0 3
      %1808 = vperm.xlu0 %1807, %v1088
      %v1809 = vpop.permute.xlu0 %1808
      %1811 = vset.pattern.permute.xlu0 3
      %1812 = vperm.xlu0 %1811, %v1093
      %v1813 = vpop.permute.xlu0 %1812
      %1815 = vset.pattern.permute.xlu0 3
      %1816 = vperm.xlu0 %1815, %v1098
      %v1817 = vpop.permute.xlu0 %1816
      %1819 = vset.pattern.permute.xlu0 3
      %1820 = vperm.xlu0 %1819, %v1103
      %v1821 = vpop.permute.xlu0 %1820
      %1823 = vset.pattern.permute.xlu0 3
      %1824 = vperm.xlu0 %1823, %v1108
      %v1825 = vpop.permute.xlu0 %1824
      %1827 = vset.pattern.permute.xlu0 3
      %1828 = vperm.xlu0 %1827, %v1113
      %v1829 = vpop.permute.xlu0 %1828
      %1831 = vset.pattern.permute.xlu0 3
      %1832 = vperm.xlu0 %1831, %v1118
      %v1833 = vpop.permute.xlu0 %1832
      %1835 = vset.pattern.permute.xlu0 3
      %1836 = vperm.xlu0 %1835, %v1123
      %v1837 = vpop.permute.xlu0 %1836
      %v1839 = vmul.f32 %v1777, %v1249
      %v1840 = vmul.f32 %v1781, %v1255
      %v1841 = vmul.f32 %v1785, %v1261
      %v1842 = vmul.f32 %v1789, %v1267
      %v1843 = vmul.f32 %v1793, %v1273
      %v1844 = vmul.f32 %v1797, %v1279
      %v1845 = vmul.f32 %v1801, %v1285
      %v1846 = vmul.f32 %v1805, %v1291
      %v1847 = vmul.f32 %v1809, %v1297
      %v1848 = vmul.f32 %v1813, %v1303
      %v1849 = vmul.f32 %v1817, %v1309
      %v1850 = vmul.f32 %v1821, %v1315
      %v1851 = vmul.f32 %v1825, %v1321
      %v1852 = vmul.f32 %v1829, %v1327
      %v1853 = vmul.f32 %v1833, %v1333
      %v1854 = vmul.f32 %v1837, %v1339
      %1871 = vrot.lane.b32.xlu0 %v1839, 32
      %v1872 = vpop.permute.xlu0 %1871
      %1873 = vrot.lane.b32.xlu0 %v1840, 32
      %v1874 = vpop.permute.xlu0 %1873
      %1875 = vrot.lane.b32.xlu0 %v1841, 32
      %v1876 = vpop.permute.xlu0 %1875
      %1877 = vrot.lane.b32.xlu0 %v1842, 32
      %v1878 = vpop.permute.xlu0 %1877
      %1879 = vrot.lane.b32.xlu0 %v1843, 32
      %v1880 = vpop.permute.xlu0 %1879
      %1881 = vrot.lane.b32.xlu0 %v1844, 32
      %v1882 = vpop.permute.xlu0 %1881
      %1883 = vrot.lane.b32.xlu0 %v1845, 32
      %v1884 = vpop.permute.xlu0 %1883
      %1885 = vrot.lane.b32.xlu0 %v1846, 32
      %v1886 = vpop.permute.xlu0 %1885
      %1887 = vrot.lane.b32.xlu0 %v1847, 32
      %v1888 = vpop.permute.xlu0 %1887
      %1889 = vrot.lane.b32.xlu0 %v1848, 32
      %v1890 = vpop.permute.xlu0 %1889
      %1891 = vrot.lane.b32.xlu0 %v1849, 32
      %v1892 = vpop.permute.xlu0 %1891
      %1893 = vrot.lane.b32.xlu0 %v1850, 32
      %v1894 = vpop.permute.xlu0 %1893
      %1895 = vrot.lane.b32.xlu0 %v1851, 32
      %v1896 = vpop.permute.xlu0 %1895
      %1897 = vrot.lane.b32.xlu0 %v1852, 32
      %v1898 = vpop.permute.xlu0 %1897
      %1899 = vrot.lane.b32.xlu0 %v1853, 32
      %v1900 = vpop.permute.xlu0 %1899
      %1901 = vrot.lane.b32.xlu0 %v1854, 32
      %v1902 = vpop.permute.xlu0 %1901
      %v1919 = vadd.f32 %v1759, %v1872
      %v1920 = vadd.f32 %v1760, %v1874
      %v1921 = vadd.f32 %v1761, %v1876
      %v1922 = vadd.f32 %v1762, %v1878
      %v1923 = vadd.f32 %v1763, %v1880
      %v1924 = vadd.f32 %v1764, %v1882
      %v1925 = vadd.f32 %v1765, %v1884
      %v1926 = vadd.f32 %v1766, %v1886
      %v1927 = vadd.f32 %v1767, %v1888
      %v1928 = vadd.f32 %v1768, %v1890
      %v1929 = vadd.f32 %v1769, %v1892
      %v1930 = vadd.f32 %v1770, %v1894
      %v1931 = vadd.f32 %v1771, %v1896
      %v1932 = vadd.f32 %v1772, %v1898
      %v1933 = vadd.f32 %v1773, %v1900
      %v1934 = vadd.f32 %v1774, %v1902
      %1935 = vset.pattern.permute.xlu0 4
      %1936 = vperm.xlu0 %1935, %v1048
      %v1937 = vpop.permute.xlu0 %1936
      %1939 = vset.pattern.permute.xlu0 4
      %1940 = vperm.xlu0 %1939, %v1053
      %v1941 = vpop.permute.xlu0 %1940
      %1943 = vset.pattern.permute.xlu0 4
      %1944 = vperm.xlu0 %1943, %v1058
      %v1945 = vpop.permute.xlu0 %1944
      %1947 = vset.pattern.permute.xlu0 4
      %1948 = vperm.xlu0 %1947, %v1063
      %v1949 = vpop.permute.xlu0 %1948
      %1951 = vset.pattern.permute.xlu0 4
      %1952 = vperm.xlu0 %1951, %v1068
      %v1953 = vpop.permute.xlu0 %1952
      %1955 = vset.pattern.permute.xlu0 4
      %1956 = vperm.xlu0 %1955, %v1073
      %v1957 = vpop.permute.xlu0 %1956
      %1959 = vset.pattern.permute.xlu0 4
      %1960 = vperm.xlu0 %1959, %v1078
      %v1961 = vpop.permute.xlu0 %1960
      %1963 = vset.pattern.permute.xlu0 4
      %1964 = vperm.xlu0 %1963, %v1083
      %v1965 = vpop.permute.xlu0 %1964
      %1967 = vset.pattern.permute.xlu0 4
      %1968 = vperm.xlu0 %1967, %v1088
      %v1969 = vpop.permute.xlu0 %1968
      %1971 = vset.pattern.permute.xlu0 4
      %1972 = vperm.xlu0 %1971, %v1093
      %v1973 = vpop.permute.xlu0 %1972
      %1975 = vset.pattern.permute.xlu0 4
      %1976 = vperm.xlu0 %1975, %v1098
      %v1977 = vpop.permute.xlu0 %1976
      %1979 = vset.pattern.permute.xlu0 4
      %1980 = vperm.xlu0 %1979, %v1103
      %v1981 = vpop.permute.xlu0 %1980
      %1983 = vset.pattern.permute.xlu0 4
      %1984 = vperm.xlu0 %1983, %v1108
      %v1985 = vpop.permute.xlu0 %1984
      %1987 = vset.pattern.permute.xlu0 4
      %1988 = vperm.xlu0 %1987, %v1113
      %v1989 = vpop.permute.xlu0 %1988
      %1991 = vset.pattern.permute.xlu0 4
      %1992 = vperm.xlu0 %1991, %v1118
      %v1993 = vpop.permute.xlu0 %1992
      %1995 = vset.pattern.permute.xlu0 4
      %1996 = vperm.xlu0 %1995, %v1123
      %v1997 = vpop.permute.xlu0 %1996
      %v1999 = vmul.f32 %v1937, %v1251
      %v2000 = vmul.f32 %v1941, %v1257
      %v2001 = vmul.f32 %v1945, %v1263
      %v2002 = vmul.f32 %v1949, %v1269
      %v2003 = vmul.f32 %v1953, %v1275
      %v2004 = vmul.f32 %v1957, %v1281
      %v2005 = vmul.f32 %v1961, %v1287
      %v2006 = vmul.f32 %v1965, %v1293
      %v2007 = vmul.f32 %v1969, %v1299
      %v2008 = vmul.f32 %v1973, %v1305
      %v2009 = vmul.f32 %v1977, %v1311
      %v2010 = vmul.f32 %v1981, %v1317
      %v2011 = vmul.f32 %v1985, %v1323
      %v2012 = vmul.f32 %v1989, %v1329
      %v2013 = vmul.f32 %v1993, %v1335
      %v2014 = vmul.f32 %v1997, %v1341
      %v2015 = vadd.f32 %v1919, %v1999
      %v2016 = vadd.f32 %v1920, %v2000
      %v2017 = vadd.f32 %v1921, %v2001
      %v2018 = vadd.f32 %v1922, %v2002
      %v2019 = vadd.f32 %v1923, %v2003
      %v2020 = vadd.f32 %v1924, %v2004
      %v2021 = vadd.f32 %v1925, %v2005
      %v2022 = vadd.f32 %v1926, %v2006
      %v2023 = vadd.f32 %v1927, %v2007
      %v2024 = vadd.f32 %v1928, %v2008
      %v2025 = vadd.f32 %v1929, %v2009
      %v2026 = vadd.f32 %v1930, %v2010
      %v2027 = vadd.f32 %v1931, %v2011
      %v2028 = vadd.f32 %v1932, %v2012
      %v2029 = vadd.f32 %v1933, %v2013
      %v2030 = vadd.f32 %v1934, %v2014
      %2031 = vset.pattern.permute.xlu0 5
      %2032 = vperm.xlu0 %2031, %v1048
      %v2033 = vpop.permute.xlu0 %2032
      %2035 = vset.pattern.permute.xlu0 5
      %2036 = vperm.xlu0 %2035, %v1053
      %v2037 = vpop.permute.xlu0 %2036
      %2039 = vset.pattern.permute.xlu0 5
      %2040 = vperm.xlu0 %2039, %v1058
      %v2041 = vpop.permute.xlu0 %2040
      %2043 = vset.pattern.permute.xlu0 5
      %2044 = vperm.xlu0 %2043, %v1063
      %v2045 = vpop.permute.xlu0 %2044
      %2047 = vset.pattern.permute.xlu0 5
      %2048 = vperm.xlu0 %2047, %v1068
      %v2049 = vpop.permute.xlu0 %2048
      %2051 = vset.pattern.permute.xlu0 5
      %2052 = vperm.xlu0 %2051, %v1073
      %v2053 = vpop.permute.xlu0 %2052
      %2055 = vset.pattern.permute.xlu0 5
      %2056 = vperm.xlu0 %2055, %v1078
      %v2057 = vpop.permute.xlu0 %2056
      %2059 = vset.pattern.permute.xlu0 5
      %2060 = vperm.xlu0 %2059, %v1083
      %v2061 = vpop.permute.xlu0 %2060
      %2063 = vset.pattern.permute.xlu0 5
      %2064 = vperm.xlu0 %2063, %v1088
      %v2065 = vpop.permute.xlu0 %2064
      %2067 = vset.pattern.permute.xlu0 5
      %2068 = vperm.xlu0 %2067, %v1093
      %v2069 = vpop.permute.xlu0 %2068
      %2071 = vset.pattern.permute.xlu0 5
      %2072 = vperm.xlu0 %2071, %v1098
      %v2073 = vpop.permute.xlu0 %2072
      %2075 = vset.pattern.permute.xlu0 5
      %2076 = vperm.xlu0 %2075, %v1103
      %v2077 = vpop.permute.xlu0 %2076
      %2079 = vset.pattern.permute.xlu0 5
      %2080 = vperm.xlu0 %2079, %v1108
      %v2081 = vpop.permute.xlu0 %2080
      %2083 = vset.pattern.permute.xlu0 5
      %2084 = vperm.xlu0 %2083, %v1113
      %v2085 = vpop.permute.xlu0 %2084
      %2087 = vset.pattern.permute.xlu0 5
      %2088 = vperm.xlu0 %2087, %v1118
      %v2089 = vpop.permute.xlu0 %2088
      %2091 = vset.pattern.permute.xlu0 5
      %2092 = vperm.xlu0 %2091, %v1123
      %v2093 = vpop.permute.xlu0 %2092
      %v2095 = vmul.f32 %v2033, %v1251
      %v2096 = vmul.f32 %v2037, %v1257
      %v2097 = vmul.f32 %v2041, %v1263
      %v2098 = vmul.f32 %v2045, %v1269
      %v2099 = vmul.f32 %v2049, %v1275
      %v2100 = vmul.f32 %v2053, %v1281
      %v2101 = vmul.f32 %v2057, %v1287
      %v2102 = vmul.f32 %v2061, %v1293
      %v2103 = vmul.f32 %v2065, %v1299
      %v2104 = vmul.f32 %v2069, %v1305
      %v2105 = vmul.f32 %v2073, %v1311
      %v2106 = vmul.f32 %v2077, %v1317
      %v2107 = vmul.f32 %v2081, %v1323
      %v2108 = vmul.f32 %v2085, %v1329
      %v2109 = vmul.f32 %v2089, %v1335
      %v2110 = vmul.f32 %v2093, %v1341
      %2127 = vrot.lane.b32.xlu0 %v2095, 96
      %v2128 = vpop.permute.xlu0 %2127
      %2129 = vrot.lane.b32.xlu0 %v2096, 96
      %v2130 = vpop.permute.xlu0 %2129
      %2131 = vrot.lane.b32.xlu0 %v2097, 96
      %v2132 = vpop.permute.xlu0 %2131
      %2133 = vrot.lane.b32.xlu0 %v2098, 96
      %v2134 = vpop.permute.xlu0 %2133
      %2135 = vrot.lane.b32.xlu0 %v2099, 96
      %v2136 = vpop.permute.xlu0 %2135
      %2137 = vrot.lane.b32.xlu0 %v2100, 96
      %v2138 = vpop.permute.xlu0 %2137
      %2139 = vrot.lane.b32.xlu0 %v2101, 96
      %v2140 = vpop.permute.xlu0 %2139
      %2141 = vrot.lane.b32.xlu0 %v2102, 96
      %v2142 = vpop.permute.xlu0 %2141
      %2143 = vrot.lane.b32.xlu0 %v2103, 96
      %v2144 = vpop.permute.xlu0 %2143
      %2145 = vrot.lane.b32.xlu0 %v2104, 96
      %v2146 = vpop.permute.xlu0 %2145
      %2147 = vrot.lane.b32.xlu0 %v2105, 96
      %v2148 = vpop.permute.xlu0 %2147
      %2149 = vrot.lane.b32.xlu0 %v2106, 96
      %v2150 = vpop.permute.xlu0 %2149
      %2151 = vrot.lane.b32.xlu0 %v2107, 96
      %v2152 = vpop.permute.xlu0 %2151
      %2153 = vrot.lane.b32.xlu0 %v2108, 96
      %v2154 = vpop.permute.xlu0 %2153
      %2155 = vrot.lane.b32.xlu0 %v2109, 96
      %v2156 = vpop.permute.xlu0 %2155
      %2157 = vrot.lane.b32.xlu0 %v2110, 96
      %v2158 = vpop.permute.xlu0 %2157
      %v2175 = vadd.f32 %v2015, %v2128
      %v2176 = vadd.f32 %v2016, %v2130
      %v2177 = vadd.f32 %v2017, %v2132
      %v2178 = vadd.f32 %v2018, %v2134
      %v2179 = vadd.f32 %v2019, %v2136
      %v2180 = vadd.f32 %v2020, %v2138
      %v2181 = vadd.f32 %v2021, %v2140
      %v2182 = vadd.f32 %v2022, %v2142
      %v2183 = vadd.f32 %v2023, %v2144
      %v2184 = vadd.f32 %v2024, %v2146
      %v2185 = vadd.f32 %v2025, %v2148
      %v2186 = vadd.f32 %v2026, %v2150
      %v2187 = vadd.f32 %v2027, %v2152
      %v2188 = vadd.f32 %v2028, %v2154
      %v2189 = vadd.f32 %v2029, %v2156
      %v2190 = vadd.f32 %v2030, %v2158
      %2191 = vset.pattern.permute.xlu0 6
      %2192 = vperm.xlu0 %2191, %v1048
      %v2193 = vpop.permute.xlu0 %2192
      %2195 = vset.pattern.permute.xlu0 6
      %2196 = vperm.xlu0 %2195, %v1053
      %v2197 = vpop.permute.xlu0 %2196
      %2199 = vset.pattern.permute.xlu0 6
      %2200 = vperm.xlu0 %2199, %v1058
      %v2201 = vpop.permute.xlu0 %2200
      %2203 = vset.pattern.permute.xlu0 6
      %2204 = vperm.xlu0 %2203, %v1063
      %v2205 = vpop.permute.xlu0 %2204
      %2207 = vset.pattern.permute.xlu0 6
      %2208 = vperm.xlu0 %2207, %v1068
      %v2209 = vpop.permute.xlu0 %2208
      %2211 = vset.pattern.permute.xlu0 6
      %2212 = vperm.xlu0 %2211, %v1073
      %v2213 = vpop.permute.xlu0 %2212
      %2215 = vset.pattern.permute.xlu0 6
      %2216 = vperm.xlu0 %2215, %v1078
      %v2217 = vpop.permute.xlu0 %2216
      %2219 = vset.pattern.permute.xlu0 6
      %2220 = vperm.xlu0 %2219, %v1083
      %v2221 = vpop.permute.xlu0 %2220
      %2223 = vset.pattern.permute.xlu0 6
      %2224 = vperm.xlu0 %2223, %v1088
      %v2225 = vpop.permute.xlu0 %2224
      %2227 = vset.pattern.permute.xlu0 6
      %2228 = vperm.xlu0 %2227, %v1093
      %v2229 = vpop.permute.xlu0 %2228
      %2231 = vset.pattern.permute.xlu0 6
      %2232 = vperm.xlu0 %2231, %v1098
      %v2233 = vpop.permute.xlu0 %2232
      %2235 = vset.pattern.permute.xlu0 6
      %2236 = vperm.xlu0 %2235, %v1103
      %v2237 = vpop.permute.xlu0 %2236
      %2239 = vset.pattern.permute.xlu0 6
      %2240 = vperm.xlu0 %2239, %v1108
      %v2241 = vpop.permute.xlu0 %2240
      %2243 = vset.pattern.permute.xlu0 6
      %2244 = vperm.xlu0 %2243, %v1113
      %v2245 = vpop.permute.xlu0 %2244
      %2247 = vset.pattern.permute.xlu0 6
      %2248 = vperm.xlu0 %2247, %v1118
      %v2249 = vpop.permute.xlu0 %2248
      %2251 = vset.pattern.permute.xlu0 6
      %2252 = vperm.xlu0 %2251, %v1123
      %v2253 = vpop.permute.xlu0 %2252
      %v2255 = vmul.f32 %v2193, %v1251
      %v2256 = vmul.f32 %v2197, %v1257
      %v2257 = vmul.f32 %v2201, %v1263
      %v2258 = vmul.f32 %v2205, %v1269
      %v2259 = vmul.f32 %v2209, %v1275
      %v2260 = vmul.f32 %v2213, %v1281
      %v2261 = vmul.f32 %v2217, %v1287
      %v2262 = vmul.f32 %v2221, %v1293
      %v2263 = vmul.f32 %v2225, %v1299
      %v2264 = vmul.f32 %v2229, %v1305
      %v2265 = vmul.f32 %v2233, %v1311
      %v2266 = vmul.f32 %v2237, %v1317
      %v2267 = vmul.f32 %v2241, %v1323
      %v2268 = vmul.f32 %v2245, %v1329
      %v2269 = vmul.f32 %v2249, %v1335
      %v2270 = vmul.f32 %v2253, %v1341
      %2287 = vrot.lane.b32.xlu0 %v2255, 64
      %v2288 = vpop.permute.xlu0 %2287
      %2289 = vrot.lane.b32.xlu0 %v2256, 64
      %v2290 = vpop.permute.xlu0 %2289
      %2291 = vrot.lane.b32.xlu0 %v2257, 64
      %v2292 = vpop.permute.xlu0 %2291
      %2293 = vrot.lane.b32.xlu0 %v2258, 64
      %v2294 = vpop.permute.xlu0 %2293
      %2295 = vrot.lane.b32.xlu0 %v2259, 64
      %v2296 = vpop.permute.xlu0 %2295
      %2297 = vrot.lane.b32.xlu0 %v2260, 64
      %v2298 = vpop.permute.xlu0 %2297
      %2299 = vrot.lane.b32.xlu0 %v2261, 64
      %v2300 = vpop.permute.xlu0 %2299
      %2301 = vrot.lane.b32.xlu0 %v2262, 64
      %v2302 = vpop.permute.xlu0 %2301
      %2303 = vrot.lane.b32.xlu0 %v2263, 64
      %v2304 = vpop.permute.xlu0 %2303
      %2305 = vrot.lane.b32.xlu0 %v2264, 64
      %v2306 = vpop.permute.xlu0 %2305
      %2307 = vrot.lane.b32.xlu0 %v2265, 64
      %v2308 = vpop.permute.xlu0 %2307
      %2309 = vrot.lane.b32.xlu0 %v2266, 64
      %v2310 = vpop.permute.xlu0 %2309
      %2311 = vrot.lane.b32.xlu0 %v2267, 64
      %v2312 = vpop.permute.xlu0 %2311
      %2313 = vrot.lane.b32.xlu0 %v2268, 64
      %v2314 = vpop.permute.xlu0 %2313
      %2315 = vrot.lane.b32.xlu0 %v2269, 64
      %v2316 = vpop.permute.xlu0 %2315
      %2317 = vrot.lane.b32.xlu0 %v2270, 64
      %v2318 = vpop.permute.xlu0 %2317
      %v2335 = vadd.f32 %v2175, %v2288
      %v2336 = vadd.f32 %v2176, %v2290
      %v2337 = vadd.f32 %v2177, %v2292
      %v2338 = vadd.f32 %v2178, %v2294
      %v2339 = vadd.f32 %v2179, %v2296
      %v2340 = vadd.f32 %v2180, %v2298
      %v2341 = vadd.f32 %v2181, %v2300
      %v2342 = vadd.f32 %v2182, %v2302
      %v2343 = vadd.f32 %v2183, %v2304
      %v2344 = vadd.f32 %v2184, %v2306
      %v2345 = vadd.f32 %v2185, %v2308
      %v2346 = vadd.f32 %v2186, %v2310
      %v2347 = vadd.f32 %v2187, %v2312
      %v2348 = vadd.f32 %v2188, %v2314
      %v2349 = vadd.f32 %v2189, %v2316
      %v2350 = vadd.f32 %v2190, %v2318
      %2351 = vset.pattern.permute.xlu0 7
      %2352 = vperm.xlu0 %2351, %v1048
      %v2353 = vpop.permute.xlu0 %2352
      %2355 = vset.pattern.permute.xlu0 7
      %2356 = vperm.xlu0 %2355, %v1053
      %v2357 = vpop.permute.xlu0 %2356
      %2359 = vset.pattern.permute.xlu0 7
      %2360 = vperm.xlu0 %2359, %v1058
      %v2361 = vpop.permute.xlu0 %2360
      %2363 = vset.pattern.permute.xlu0 7
      %2364 = vperm.xlu0 %2363, %v1063
      %v2365 = vpop.permute.xlu0 %2364
      %2367 = vset.pattern.permute.xlu0 7
      %2368 = vperm.xlu0 %2367, %v1068
      %v2369 = vpop.permute.xlu0 %2368
      %2371 = vset.pattern.permute.xlu0 7
      %2372 = vperm.xlu0 %2371, %v1073
      %v2373 = vpop.permute.xlu0 %2372
      %2375 = vset.pattern.permute.xlu0 7
      %2376 = vperm.xlu0 %2375, %v1078
      %v2377 = vpop.permute.xlu0 %2376
      %2379 = vset.pattern.permute.xlu0 7
      %2380 = vperm.xlu0 %2379, %v1083
      %v2381 = vpop.permute.xlu0 %2380
      %2383 = vset.pattern.permute.xlu0 7
      %2384 = vperm.xlu0 %2383, %v1088
      %v2385 = vpop.permute.xlu0 %2384
      %2387 = vset.pattern.permute.xlu0 7
      %2388 = vperm.xlu0 %2387, %v1093
      %v2389 = vpop.permute.xlu0 %2388
      %2391 = vset.pattern.permute.xlu0 7
      %2392 = vperm.xlu0 %2391, %v1098
      %v2393 = vpop.permute.xlu0 %2392
      %2395 = vset.pattern.permute.xlu0 7
      %2396 = vperm.xlu0 %2395, %v1103
      %v2397 = vpop.permute.xlu0 %2396
      %2399 = vset.pattern.permute.xlu0 7
      %2400 = vperm.xlu0 %2399, %v1108
      %v2401 = vpop.permute.xlu0 %2400
      %2403 = vset.pattern.permute.xlu0 7
      %2404 = vperm.xlu0 %2403, %v1113
      %v2405 = vpop.permute.xlu0 %2404
      %2407 = vset.pattern.permute.xlu0 7
      %2408 = vperm.xlu0 %2407, %v1118
      %v2409 = vpop.permute.xlu0 %2408
      %2411 = vset.pattern.permute.xlu0 7
      %2412 = vperm.xlu0 %2411, %v1123
      %v2413 = vpop.permute.xlu0 %2412
      %v2415 = vmul.f32 %v2353, %v1251
      %v2416 = vmul.f32 %v2357, %v1257
      %v2417 = vmul.f32 %v2361, %v1263
      %v2418 = vmul.f32 %v2365, %v1269
      %v2419 = vmul.f32 %v2369, %v1275
      %v2420 = vmul.f32 %v2373, %v1281
      %v2421 = vmul.f32 %v2377, %v1287
      %v2422 = vmul.f32 %v2381, %v1293
      %v2423 = vmul.f32 %v2385, %v1299
      %v2424 = vmul.f32 %v2389, %v1305
      %v2425 = vmul.f32 %v2393, %v1311
      %v2426 = vmul.f32 %v2397, %v1317
      %v2427 = vmul.f32 %v2401, %v1323
      %v2428 = vmul.f32 %v2405, %v1329
      %v2429 = vmul.f32 %v2409, %v1335
      %v2430 = vmul.f32 %v2413, %v1341
      %2447 = vrot.lane.b32.xlu0 %v2415, 32
      %v2448 = vpop.permute.xlu0 %2447
      %2449 = vrot.lane.b32.xlu0 %v2416, 32
      %v2450 = vpop.permute.xlu0 %2449
      %2451 = vrot.lane.b32.xlu0 %v2417, 32
      %v2452 = vpop.permute.xlu0 %2451
      %2453 = vrot.lane.b32.xlu0 %v2418, 32
      %v2454 = vpop.permute.xlu0 %2453
      %2455 = vrot.lane.b32.xlu0 %v2419, 32
      %v2456 = vpop.permute.xlu0 %2455
      %2457 = vrot.lane.b32.xlu0 %v2420, 32
      %v2458 = vpop.permute.xlu0 %2457
      %2459 = vrot.lane.b32.xlu0 %v2421, 32
      %v2460 = vpop.permute.xlu0 %2459
      %2461 = vrot.lane.b32.xlu0 %v2422, 32
      %v2462 = vpop.permute.xlu0 %2461
      %2463 = vrot.lane.b32.xlu0 %v2423, 32
      %v2464 = vpop.permute.xlu0 %2463
      %2465 = vrot.lane.b32.xlu0 %v2424, 32
      %v2466 = vpop.permute.xlu0 %2465
      %2467 = vrot.lane.b32.xlu0 %v2425, 32
      %v2468 = vpop.permute.xlu0 %2467
      %2469 = vrot.lane.b32.xlu0 %v2426, 32
      %v2470 = vpop.permute.xlu0 %2469
      %2471 = vrot.lane.b32.xlu0 %v2427, 32
      %v2472 = vpop.permute.xlu0 %2471
      %2473 = vrot.lane.b32.xlu0 %v2428, 32
      %v2474 = vpop.permute.xlu0 %2473
      %2475 = vrot.lane.b32.xlu0 %v2429, 32
      %v2476 = vpop.permute.xlu0 %2475
      %2477 = vrot.lane.b32.xlu0 %v2430, 32
      %v2478 = vpop.permute.xlu0 %2477
      %v2495 = vadd.f32 %v2335, %v2448
      %v2496 = vadd.f32 %v2336, %v2450
      %v2497 = vadd.f32 %v2337, %v2452
      %v2498 = vadd.f32 %v2338, %v2454
      %v2499 = vadd.f32 %v2339, %v2456
      %v2500 = vadd.f32 %v2340, %v2458
      %v2501 = vadd.f32 %v2341, %v2460
      %v2502 = vadd.f32 %v2342, %v2462
      %v2503 = vadd.f32 %v2343, %v2464
      %v2504 = vadd.f32 %v2344, %v2466
      %v2505 = vadd.f32 %v2345, %v2468
      %v2506 = vadd.f32 %v2346, %v2470
      %v2507 = vadd.f32 %v2347, %v2472
      %v2508 = vadd.f32 %v2348, %v2474
      %v2509 = vadd.f32 %v2349, %v2476
      %v2510 = vadd.f32 %v2350, %v2478
      %2511 = vst.msk [vmem:[%s351] sm:$0xff] %vm591, %v2495
      %2512 = vst.msk [vmem:[%s351 + $0x8] sm:$0xff] %vm591, %v2496
      %2513 = vst.msk [vmem:[%s351 + $0x10] sm:$0xff] %vm591, %v2497
      %2514 = vst.msk [vmem:[%s351 + $0x18] sm:$0xff] %vm591, %v2498
      %2515 = vst.msk [vmem:[%s351 + $0x20] sm:$0xff] %vm591, %v2499
      %2516 = vst.msk [vmem:[%s351 + $0x28] sm:$0xff] %vm591, %v2500
      %2517 = vst.msk [vmem:[%s351 + $0x30] sm:$0xff] %vm591, %v2501
      %2518 = vst.msk [vmem:[%s351 + $0x38] sm:$0xff] %vm591, %v2502
      %2519 = vst.msk [vmem:[%s351 + $0x40] sm:$0xff] %vm591, %v2503
      %2520 = vst.msk [vmem:[%s351 + $0x48] sm:$0xff] %vm591, %v2504
      %2521 = vst.msk [vmem:[%s351 + $0x50] sm:$0xff] %vm591, %v2505
      %2522 = vst.msk [vmem:[%s351 + $0x58] sm:$0xff] %vm591, %v2506
      %2523 = vst.msk [vmem:[%s351 + $0x60] sm:$0xff] %vm591, %v2507
      %2524 = vst.msk [vmem:[%s351 + $0x68] sm:$0xff] %vm591, %v2508
      %2525 = vst.msk [vmem:[%s351 + $0x70] sm:$0xff] %vm591, %v2509
      %2526 = vst.msk [vmem:[%s351 + $0x78] sm:$0xff] %vm591, %v2510
      %s2527 = smul.u32 16, %s19
      %p2528 = scmp.lt.s32.totalorder %s2527, 31
      %s2529 = scalar_select %p2528, %s2527, 31
      %s2530 = smul.addr %s2529, 8
      %s2531 = scalar_lea.vmem %s8, %s2530
      // Predicated region
      $region53: #{tpu_custom_call.1} parent=51 // pred_check
        %p2532 = pneg %p220
      $region54: #{tpu_custom_call.1} parent=51 // pred_check_branch
        %2534 = sbr.rel (%p2532) target = $region56
      $region55: #{tpu_custom_call.1} parent=51 // pred_region
        %s2535 = smul.u32 16, %s19
      $region56: #{tpu_custom_call.1} parent=51 // pred_fallthru
        _
    $region52: #{tpu_custom_call.1} parent=5 // pred_fallthru
      _
    %p2536 = scmp.le.s32.totalorder 2, %s14
    // Predicated region
    $region57: #{tpu_custom_call.1} parent=5 // pred_check
      %p2537 = pneg %p2536
    $region58: #{tpu_custom_call.1} parent=5 // pred_check_branch
      %2539 = sbr.rel (%p2537) target = $region60
    $region59: #{tpu_custom_call.1} parent=5 // pred_region
      %s2540 = ssub.s32 %s14, 2
      // Predicated region
      $region61: #{tpu_custom_call.1} parent=59 // pred_check
        %p2541 = pneg %p226
      $region62: #{tpu_custom_call.1} parent=59 // pred_check_branch
        %2543 = sbr.rel (%p2541) target = $region64
      $region63: #{tpu_custom_call.1} parent=59 // pred_region
        %s2544 = smul.u32 16, %s20
        %p2545 = scmp.lt.s32.totalorder %s2544, 31
        %s2546 = scalar_select %p2545, %s2544, 31
        %s2547 = smul.addr %s2546, 8
        %s2548 = scalar_lea.vmem %s8, %s2547
      $region64: #{tpu_custom_call.1} parent=59 // pred_fallthru
        _
    $region60: #{tpu_custom_call.1} parent=5 // pred_fallthru
      _
  $region6: #{tpu_custom_call.1} parent=0 // loop_footer
    %s18 = sadd.s32 1, %s14
  $region7: #{tpu_custom_call.1} parent=0 // loop_footer_branch
    %13 = sbr.rel target = $region3
  $region8: #{tpu_custom_call.1} parent=0 // loop_exit
    _

</llo_original>
